<compile_context>
chip_gen: v6e
topology: v6e:2x2x1
jax: 0.10.0
libtpu: 0.0.40
codegen_flags: <defaults>
</compile_context>

<pallas_src>
import functools

import jax
import jax.numpy as jnp
from jax import lax
from jax.experimental import pallas as pl
from jax.experimental.pallas import tpu as pltpu


def rnn_chunk_kernel(x_ref,      # (Tc, B, I)  time-major x chunk
                     wih0_ref,   # (I, H)   layer-0 input->hidden  (transposed)
                     whh0_ref,   # (H, H)   layer-0 hidden->hidden (transposed)
                     b0_ref,     # (1, H)   layer-0 bias (b_ih0 + b_hh0), f32
                     wih1_ref,   # (H, H)   layer-1 input->hidden  (transposed)
                     whh1_ref,   # (H, H)   layer-1 hidden->hidden (transposed)
                     b1_ref,     # (1, H)   layer-1 bias (b_ih1 + b_hh1), f32
                     wl_ref,     # (H, Cp)  linear head weight (transposed, lane-padded)
                     bl_ref,     # (1, Cp)  linear head bias (lane-padded)
                     out_ref,    # (B, Cp)  lane-dense padded output (written at last chunk)
                     h0_ref,     # scratch (B, H) f32 -- persists across grid steps
                     h1_ref,     # scratch (B, H) f32 -- persists across grid steps
                     *, t_chunk):
    c = pl.program_id(0)

    # Initialize the carried hidden states on the first chunk only.
    @pl.when(c == 0)
    def _():
        h0_ref[...] = jnp.zeros_like(h0_ref)
        h1_ref[...] = jnp.zeros_like(h1_ref)

    B, H = h0_ref.shape
    mxu_dtype = whh0_ref.dtype

    # Hoist loop-invariant weights and bias broadcasts out of the (unrolled)
    # loop body: JAX does not CSE broadcast_in_dim (review item 2).
    wih0 = wih0_ref[...]
    whh0 = whh0_ref[...]
    wih1 = wih1_ref[...]
    whh1 = whh1_ref[...]
    b0b = jnp.broadcast_to(b0_ref[...], (B, H))
    b1b = jnp.broadcast_to(b1_ref[...], (B, H))

    def step(t, carry):
        h0, h1 = carry                                   # (B, H) f32 each
        # Leading-axis squeezed read -- no sublane-unaligned slice (item 1).
        x_t = x_ref[t]                                   # (B, I)
        # Layer-0 input projection is carry-independent, so its MXU push hides
        # in the dead cycles of the serial chain (item 7).
        xp = jnp.dot(x_t, wih0, preferred_element_type=jnp.float32) + b0b
        h0n = jnp.tanh(
            xp + jnp.dot(h0.astype(mxu_dtype), whh0,
                         preferred_element_type=jnp.float32))
        # Layer 1: two dots instead of concat + fused dot (item 3); on v7x the
        # MRB accumulates the second dot in place.
        h1n = jnp.tanh(
            jnp.dot(h0n.astype(mxu_dtype), wih1,
                    preferred_element_type=jnp.float32)
            + jnp.dot(h1.astype(mxu_dtype), whh1,
                      preferred_element_type=jnp.float32)
            + b1b)
        return h0n, h1n

    h0, h1 = lax.fori_loop(0, t_chunk, step, (h0_ref[...], h1_ref[...]),
                           unroll=min(t_chunk, 4))       # item 9
    h0_ref[...] = h0
    h1_ref[...] = h1

    # Linear head on rnn_output[:, -1, :] == final layer-1 hidden state.
    @pl.when(c == pl.num_programs(0) - 1)
    def _():
        out_ref[...] = (
            jnp.dot(h1, wl_ref[...], preferred_element_type=jnp.float32)
            + bl_ref[...])


def rnn_model_forward(x, params, *, t_chunk=None, compute_dtype=jnp.float32):
    """x: (B, T, n_input) float32 (batch_first, like PyTorch). Returns (B, n_class).

    compute_dtype controls the MXU operand dtype (bf16 is fine on v5e/v6e/v7x at
    production H -- elementwise math stays f32 -- but compounds rounding through
    the recurrence, so keep f32 when validating against a tight f32 reference).
    """
    (w_ih0, w_hh0, b_ih0, b_hh0,
     w_ih1, w_hh1, b_ih1, b_hh1,
     w_lin, b_lin) = params

    B, T, I = x.shape
    H = w_hh0.shape[0]
    C = w_lin.shape[0]
    Cp = max(128, ((C + 127) // 128) * 128)   # lane-pad the head output

    # Pick a time-chunk that divides T (streamed over the grid).
    if t_chunk is None:
        t_chunk = min(T, 64)
    t_chunk = max(1, min(t_chunk, T))
    while T % t_chunk != 0:
        t_chunk -= 1
    n_chunks = T // t_chunk

    # Time-major x (one cheap XLA transpose).
    # TODO(synk): fold this layout change into the BlockSpec at production sizes.
    x_tm = jnp.transpose(x, (1, 0, 2)).astype(compute_dtype)          # (T, B, I)

    wih0 = jnp.transpose(w_ih0).astype(compute_dtype)                 # (I, H)
    whh0 = jnp.transpose(w_hh0).astype(compute_dtype)                 # (H, H)
    wih1 = jnp.transpose(w_ih1).astype(compute_dtype)                 # (H, H)
    whh1 = jnp.transpose(w_hh1).astype(compute_dtype)                 # (H, H)
    b0 = (b_ih0 + b_hh0).reshape(1, H).astype(jnp.float32)            # (1, H)
    b1 = (b_ih1 + b_hh1).reshape(1, H).astype(jnp.float32)            # (1, H)
    wl = jnp.zeros((H, Cp), jnp.float32).at[:, :C].set(jnp.transpose(w_lin))
    bl = jnp.zeros((1, Cp), jnp.float32).at[:, :C].set(b_lin.reshape(1, C))

    def full_spec(a):
        return pl.BlockSpec(a.shape, lambda c: (0,) * a.ndim)

    in_specs = [
        pl.BlockSpec((t_chunk, B, I), lambda c: (c, 0, 0)),   # streamed x chunks
        full_spec(wih0), full_spec(whh0), full_spec(b0),
        full_spec(wih1), full_spec(whh1), full_spec(b1),
        full_spec(wl), full_spec(bl),
    ]
    out_spec = pl.BlockSpec((B, Cp), lambda c: (0, 0))        # resident output block

    # Explicit VMEM budget (item 5): 2x double-buffered x chunk + resident
    # weights/biases + output block + h-state scratch (using padded tile sizes),
    # with 50% headroom, clamped to what every generation can grant.
    esz = jnp.dtype(compute_dtype).itemsize
    pad = lambda n, m: ((n + m - 1) // m) * m
    need = (2 * t_chunk * pad(B, 8) * pad(I, 128) * esz
            + (pad(I, 8) + 3 * pad(H, 8)) * pad(H, 128) * esz
            + 2 * pad(1, 8) * pad(H, 128) * 4
            + (pad(H, 8) + pad(1, 8) + pad(B, 8)) * Cp * 4
            + 2 * pad(B, 8) * pad(H, 128) * 4)
    vmem_limit = int(min(max(int(need * 1.5), 32 * 1024 * 1024), 64 * 1024 * 1024))

    out_padded = pl.pallas_call(
        functools.partial(rnn_chunk_kernel, t_chunk=t_chunk),
        out_shape=jax.ShapeDtypeStruct((B, Cp), jnp.float32),
        grid=(n_chunks,),
        in_specs=in_specs,
        out_specs=out_spec,
        scratch_shapes=[pltpu.VMEM((B, H), jnp.float32),   # h0 carry
                        pltpu.VMEM((B, H), jnp.float32)],  # h1 carry
        compiler_params=pltpu.CompilerParams(
            dimension_semantics=("arbitrary",),            # serial over time chunks
            vmem_limit_bytes=vmem_limit),
    )(x_tm, wih0, whh0, b0, wih1, whh1, b1, wl, bl)
    return out_padded[:, :C]


def _init_params(key, n_input, n_hidden, n_class):
    """Deterministic init matching the PyTorch module's parameter shapes."""
    ks = jax.random.split(key, 10)
    s = 1.0 / jnp.sqrt(n_hidden)
    u = lambda k, shape: jax.random.uniform(k, shape, jnp.float32, -s, s)
    w_ih0 = u(ks[0], (n_hidden, n_input))
    w_hh0 = u(ks[1], (n_hidden, n_hidden))
    b_ih0 = u(ks[2], (n_hidden,))
    b_hh0 = u(ks[3], (n_hidden,))
    w_ih1 = u(ks[4], (n_hidden, n_hidden))
    w_hh1 = u(ks[5], (n_hidden, n_hidden))
    b_ih1 = u(ks[6], (n_hidden,))
    b_hh1 = u(ks[7], (n_hidden,))
    w_lin = u(ks[8], (n_class, n_hidden))
    b_lin = u(ks[9], (n_class,))
    return (w_ih0, w_hh0, b_ih0, b_hh0,
            w_ih1, w_hh1, b_ih1, b_hh1,
            w_lin, b_lin)


def _reference_forward(x, params):
    """Pure-JAX reference replicating nn.RNN(tanh, num_layers=2, batch_first) + Linear."""
    (w_ih0, w_hh0, b_ih0, b_hh0,
     w_ih1, w_hh1, b_ih1, b_hh1,
     w_lin, b_lin) = params
    B, T, _ = x.shape
    H = w_hh0.shape[0]
    h0 = jnp.zeros((B, H), jnp.float32)
    h1 = jnp.zeros((B, H), jnp.float32)
    for t in range(T):
        x_t = x[:, t, :]
        h0 = jnp.tanh(x_t @ w_ih0.T + b_ih0 + h0 @ w_hh0.T + b_hh0)
        h1 = jnp.tanh(h0 @ w_ih1.T + b_ih1 + h1 @ w_hh1.T + b_hh1)
    return h1 @ w_lin.T + b_lin


if __name__ == "__main__":
    B, T, n_input, n_hidden, n_class = 2, 8, 8, 32, 1

    key = jax.random.PRNGKey(0)
    k_x, k_p = jax.random.split(key)
    x = jax.random.normal(k_x, (B, T, n_input), jnp.float32)
    params = _init_params(k_p, n_input, n_hidden, n_class)

    # t_chunk=4 -> 2 grid steps, exercising the cross-chunk hidden-state carry.
    out = rnn_model_forward(x, params, t_chunk=4)
    out = jax.block_until_ready(out)

    ref = _reference_forward(x, params)
    assert out.shape == (B, n_class)
    assert jnp.allclose(out, ref, atol=1e-5, rtol=1e-5), (out, ref)

    print("KERNEL_OK")
</pallas_src>

<mosaic_0001>
module attributes {stable_mosaic.version = 11 : i64} {
  func.func @rnn_chunk_kernel(%arg0: i32, %arg1: memref<4x2x8xf32, #tpu.memory_space<vmem>>, %arg2: memref<8x32xf32, #tpu.memory_space<vmem>>, %arg3: memref<32x32xf32, #tpu.memory_space<vmem>>, %arg4: memref<1x32xf32, #tpu.memory_space<vmem>>, %arg5: memref<32x32xf32, #tpu.memory_space<vmem>>, %arg6: memref<32x32xf32, #tpu.memory_space<vmem>>, %arg7: memref<1x32xf32, #tpu.memory_space<vmem>>, %arg8: memref<32x128xf32, #tpu.memory_space<vmem>>, %arg9: memref<1x128xf32, #tpu.memory_space<vmem>>, %arg10: memref<2x128xf32, #tpu.memory_space<vmem>>, %arg11: memref<2x32xf32, #tpu.memory_space<vmem>>, %arg12: memref<2x32xf32, #tpu.memory_space<vmem>>) attributes {dimension_semantics = [#tpu.dimension_semantics<arbitrary>], iteration_bounds = array<i64: 2>, scalar_prefetch = 0 : i64, scratch_operands = 2 : i64, tpu.core_type = #tpu.core_type<tc>, window_params = [{transform_indices = @transform_0, window_bounds = array<i64: 4, 2, 8>}, {pipeline_mode = #tpu.pipeline_mode<synchronous>, transform_indices = @transform_1, window_bounds = array<i64: 8, 32>}, {pipeline_mode = #tpu.pipeline_mode<synchronous>, transform_indices = @transform_2, window_bounds = array<i64: 32, 32>}, {pipeline_mode = #tpu.pipeline_mode<synchronous>, transform_indices = @transform_3, window_bounds = array<i64: 1, 32>}, {pipeline_mode = #tpu.pipeline_mode<synchronous>, transform_indices = @transform_4, window_bounds = array<i64: 32, 32>}, {pipeline_mode = #tpu.pipeline_mode<synchronous>, transform_indices = @transform_5, window_bounds = array<i64: 32, 32>}, {pipeline_mode = #tpu.pipeline_mode<synchronous>, transform_indices = @transform_6, window_bounds = array<i64: 1, 32>}, {pipeline_mode = #tpu.pipeline_mode<synchronous>, transform_indices = @transform_7, window_bounds = array<i64: 32, 128>}, {pipeline_mode = #tpu.pipeline_mode<synchronous>, transform_indices = @transform_8, window_bounds = array<i64: 1, 128>}, {pipeline_mode = #tpu.pipeline_mode<synchronous>, transform_indices = @transform_9, window_bounds = array<i64: 2, 128>}]} {
    %c0_i32 = arith.constant 0 : i32
    %0 = arith.cmpi eq, %arg0, %c0_i32 : i32
    %1 = arith.extui %0 : i1 to i32
    %c0_i32_0 = arith.constant 0 : i32
    %2 = arith.cmpi ne, %1, %c0_i32_0 : i32
    scf.if %2 {
      %cst_46 = arith.constant 0.000000e+00 : f32
      %72 = vector.broadcast %cst_46 : f32 to vector<2x32xf32>
      %c0_47 = arith.constant 0 : index
      %c0_48 = arith.constant 0 : index
      %73 = vector.load %arg11[%c0_47, %c0_48] : memref<2x32xf32, #tpu.memory_space<vmem>>, vector<2x32xf32>
      tpu.vector_store %arg11[%c0_47, %c0_48], %72 {strides = array<i32>} : memref<2x32xf32, #tpu.memory_space<vmem>>, vector<2x32xf32>,
      %cst_49 = arith.constant 0.000000e+00 : f32
      %74 = vector.broadcast %cst_49 : f32 to vector<2x32xf32>
      %c0_50 = arith.constant 0 : index
      %c0_51 = arith.constant 0 : index
      %75 = vector.load %arg12[%c0_50, %c0_51] : memref<2x32xf32, #tpu.memory_space<vmem>>, vector<2x32xf32>
      tpu.vector_store %arg12[%c0_50, %c0_51], %74 {strides = array<i32>} : memref<2x32xf32, #tpu.memory_space<vmem>>, vector<2x32xf32>,
    } else {
    }
    %c0 = arith.constant 0 : index
    %c0_1 = arith.constant 0 : index
    %3 = vector.load %arg2[%c0, %c0_1] : memref<8x32xf32, #tpu.memory_space<vmem>>, vector<8x32xf32>
    %c0_2 = arith.constant 0 : index
    %c0_3 = arith.constant 0 : index
    %4 = vector.load %arg3[%c0_2, %c0_3] : memref<32x32xf32, #tpu.memory_space<vmem>>, vector<32x32xf32>
    %c0_4 = arith.constant 0 : index
    %c0_5 = arith.constant 0 : index
    %5 = vector.load %arg5[%c0_4, %c0_5] : memref<32x32xf32, #tpu.memory_space<vmem>>, vector<32x32xf32>
    %c0_6 = arith.constant 0 : index
    %c0_7 = arith.constant 0 : index
    %6 = vector.load %arg6[%c0_6, %c0_7] : memref<32x32xf32, #tpu.memory_space<vmem>>, vector<32x32xf32>
    %c0_8 = arith.constant 0 : index
    %c0_9 = arith.constant 0 : index
    %7 = vector.load %arg4[%c0_8, %c0_9] : memref<1x32xf32, #tpu.memory_space<vmem>>, vector<1x32xf32>
    %8 = vector.shape_cast %7 : vector<1x32xf32> to vector<1x32xf32>
    %9 = vector.broadcast %8 : vector<1x32xf32> to vector<2x32xf32>
    %c0_10 = arith.constant 0 : index
    %c0_11 = arith.constant 0 : index
    %10 = vector.load %arg7[%c0_10, %c0_11] : memref<1x32xf32, #tpu.memory_space<vmem>>, vector<1x32xf32>
    %11 = vector.shape_cast %10 : vector<1x32xf32> to vector<1x32xf32>
    %12 = vector.broadcast %11 : vector<1x32xf32> to vector<2x32xf32>
    %c0_12 = arith.constant 0 : index
    %c0_13 = arith.constant 0 : index
    %13 = vector.load %arg11[%c0_12, %c0_13] : memref<2x32xf32, #tpu.memory_space<vmem>>, vector<2x32xf32>
    %c0_14 = arith.constant 0 : index
    %c0_15 = arith.constant 0 : index
    %14 = vector.load %arg12[%c0_14, %c0_15] : memref<2x32xf32, #tpu.memory_space<vmem>>, vector<2x32xf32>
    %c0_i32_16 = arith.constant 0 : i32
    %15 = arith.index_cast %c0_i32_16 : i32 to index
    %c0_17 = arith.constant 0 : index
    %c0_18 = arith.constant 0 : index
    %16 = vector.load %arg1[%15, %c0_17, %c0_18] : memref<4x2x8xf32, #tpu.memory_space<vmem>>, vector<1x2x8xf32>
    %17 = vector.shape_cast %16 : vector<1x2x8xf32> to vector<2x8xf32>
    %cst = arith.constant dense<0.000000e+00> : vector<2x32xf32>
    %18 = tpu.matmul %17, %3, %cst {dimension_numbers = #tpu.dot_dimension_numbers<[1], [0], [0], [1], [0, 0, 1, 1], [], []>} : vector<2x8xf32>, vector<8x32xf32>, vector<2x32xf32> -> vector<2x32xf32>
    %19 = arith.addf %18, %9 : vector<2x32xf32>
    %cst_19 = arith.constant dense<0.000000e+00> : vector<2x32xf32>
    %20 = tpu.matmul %13, %4, %cst_19 {dimension_numbers = #tpu.dot_dimension_numbers<[1], [0], [0], [1], [0, 0, 1, 1], [], []>} : vector<2x32xf32>, vector<32x32xf32>, vector<2x32xf32> -> vector<2x32xf32>
    %21 = arith.addf %19, %20 : vector<2x32xf32>
    %22 = math.tanh %21 : vector<2x32xf32>
    %cst_20 = arith.constant dense<0.000000e+00> : vector<2x32xf32>
    %23 = tpu.matmul %22, %5, %cst_20 {dimension_numbers = #tpu.dot_dimension_numbers<[1], [0], [0], [1], [0, 0, 1, 1], [], []>} : vector<2x32xf32>, vector<32x32xf32>, vector<2x32xf32> -> vector<2x32xf32>
    %cst_21 = arith.constant dense<0.000000e+00> : vector<2x32xf32>
    %24 = tpu.matmul %14, %6, %cst_21 {dimension_numbers = #tpu.dot_dimension_numbers<[1], [0], [0], [1], [0, 0, 1, 1], [], []>} : vector<2x32xf32>, vector<32x32xf32>, vector<2x32xf32> -> vector<2x32xf32>
    %25 = arith.addf %23, %24 : vector<2x32xf32>
    %26 = arith.addf %25, %12 : vector<2x32xf32>
    %27 = math.tanh %26 : vector<2x32xf32>
    %c1_i32 = arith.constant 1 : i32
    %28 = arith.index_cast %c1_i32 : i32 to index
    %c0_22 = arith.constant 0 : index
    %c0_23 = arith.constant 0 : index
    %29 = vector.load %arg1[%28, %c0_22, %c0_23] : memref<4x2x8xf32, #tpu.memory_space<vmem>>, vector<1x2x8xf32>
    %30 = vector.shape_cast %29 : vector<1x2x8xf32> to vector<2x8xf32>
    %cst_24 = arith.constant dense<0.000000e+00> : vector<2x32xf32>
    %31 = tpu.matmul %30, %3, %cst_24 {dimension_numbers = #tpu.dot_dimension_numbers<[1], [0], [0], [1], [0, 0, 1, 1], [], []>} : vector<2x8xf32>, vector<8x32xf32>, vector<2x32xf32> -> vector<2x32xf32>
    %32 = arith.addf %31, %9 : vector<2x32xf32>
    %cst_25 = arith.constant dense<0.000000e+00> : vector<2x32xf32>
    %33 = tpu.matmul %22, %4, %cst_25 {dimension_numbers = #tpu.dot_dimension_numbers<[1], [0], [0], [1], [0, 0, 1, 1], [], []>} : vector<2x32xf32>, vector<32x32xf32>, vector<2x32xf32> -> vector<2x32xf32>
    %34 = arith.addf %32, %33 : vector<2x32xf32>
    %35 = math.tanh %34 : vector<2x32xf32>
    %cst_26 = arith.constant dense<0.000000e+00> : vector<2x32xf32>
    %36 = tpu.matmul %35, %5, %cst_26 {dimension_numbers = #tpu.dot_dimension_numbers<[1], [0], [0], [1], [0, 0, 1, 1], [], []>} : vector<2x32xf32>, vector<32x32xf32>, vector<2x32xf32> -> vector<2x32xf32>
    %cst_27 = arith.constant dense<0.000000e+00> : vector<2x32xf32>
    %37 = tpu.matmul %27, %6, %cst_27 {dimension_numbers = #tpu.dot_dimension_numbers<[1], [0], [0], [1], [0, 0, 1, 1], [], []>} : vector<2x32xf32>, vector<32x32xf32>, vector<2x32xf32> -> vector<2x32xf32>
    %38 = arith.addf %36, %37 : vector<2x32xf32>
    %39 = arith.addf %38, %12 : vector<2x32xf32>
    %40 = math.tanh %39 : vector<2x32xf32>
    %c2_i32 = arith.constant 2 : i32
    %41 = arith.index_cast %c2_i32 : i32 to index
    %c0_28 = arith.constant 0 : index
    %c0_29 = arith.constant 0 : index
    %42 = vector.load %arg1[%41, %c0_28, %c0_29] : memref<4x2x8xf32, #tpu.memory_space<vmem>>, vector<1x2x8xf32>
    %43 = vector.shape_cast %42 : vector<1x2x8xf32> to vector<2x8xf32>
    %cst_30 = arith.constant dense<0.000000e+00> : vector<2x32xf32>
    %44 = tpu.matmul %43, %3, %cst_30 {dimension_numbers = #tpu.dot_dimension_numbers<[1], [0], [0], [1], [0, 0, 1, 1], [], []>} : vector<2x8xf32>, vector<8x32xf32>, vector<2x32xf32> -> vector<2x32xf32>
    %45 = arith.addf %44, %9 : vector<2x32xf32>
    %cst_31 = arith.constant dense<0.000000e+00> : vector<2x32xf32>
    %46 = tpu.matmul %35, %4, %cst_31 {dimension_numbers = #tpu.dot_dimension_numbers<[1], [0], [0], [1], [0, 0, 1, 1], [], []>} : vector<2x32xf32>, vector<32x32xf32>, vector<2x32xf32> -> vector<2x32xf32>
    %47 = arith.addf %45, %46 : vector<2x32xf32>
    %48 = math.tanh %47 : vector<2x32xf32>
    %cst_32 = arith.constant dense<0.000000e+00> : vector<2x32xf32>
    %49 = tpu.matmul %48, %5, %cst_32 {dimension_numbers = #tpu.dot_dimension_numbers<[1], [0], [0], [1], [0, 0, 1, 1], [], []>} : vector<2x32xf32>, vector<32x32xf32>, vector<2x32xf32> -> vector<2x32xf32>
    %cst_33 = arith.constant dense<0.000000e+00> : vector<2x32xf32>
    %50 = tpu.matmul %40, %6, %cst_33 {dimension_numbers = #tpu.dot_dimension_numbers<[1], [0], [0], [1], [0, 0, 1, 1], [], []>} : vector<2x32xf32>, vector<32x32xf32>, vector<2x32xf32> -> vector<2x32xf32>
    %51 = arith.addf %49, %50 : vector<2x32xf32>
    %52 = arith.addf %51, %12 : vector<2x32xf32>
    %53 = math.tanh %52 : vector<2x32xf32>
    %c3_i32 = arith.constant 3 : i32
    %54 = arith.index_cast %c3_i32 : i32 to index
    %c0_34 = arith.constant 0 : index
    %c0_35 = arith.constant 0 : index
    %55 = vector.load %arg1[%54, %c0_34, %c0_35] : memref<4x2x8xf32, #tpu.memory_space<vmem>>, vector<1x2x8xf32>
    %56 = vector.shape_cast %55 : vector<1x2x8xf32> to vector<2x8xf32>
    %cst_36 = arith.constant dense<0.000000e+00> : vector<2x32xf32>
    %57 = tpu.matmul %56, %3, %cst_36 {dimension_numbers = #tpu.dot_dimension_numbers<[1], [0], [0], [1], [0, 0, 1, 1], [], []>} : vector<2x8xf32>, vector<8x32xf32>, vector<2x32xf32> -> vector<2x32xf32>
    %58 = arith.addf %57, %9 : vector<2x32xf32>
    %cst_37 = arith.constant dense<0.000000e+00> : vector<2x32xf32>
    %59 = tpu.matmul %48, %4, %cst_37 {dimension_numbers = #tpu.dot_dimension_numbers<[1], [0], [0], [1], [0, 0, 1, 1], [], []>} : vector<2x32xf32>, vector<32x32xf32>, vector<2x32xf32> -> vector<2x32xf32>
    %60 = arith.addf %58, %59 : vector<2x32xf32>
    %61 = math.tanh %60 : vector<2x32xf32>
    %cst_38 = arith.constant dense<0.000000e+00> : vector<2x32xf32>
    %62 = tpu.matmul %61, %5, %cst_38 {dimension_numbers = #tpu.dot_dimension_numbers<[1], [0], [0], [1], [0, 0, 1, 1], [], []>} : vector<2x32xf32>, vector<32x32xf32>, vector<2x32xf32> -> vector<2x32xf32>
    %cst_39 = arith.constant dense<0.000000e+00> : vector<2x32xf32>
    %63 = tpu.matmul %53, %6, %cst_39 {dimension_numbers = #tpu.dot_dimension_numbers<[1], [0], [0], [1], [0, 0, 1, 1], [], []>} : vector<2x32xf32>, vector<32x32xf32>, vector<2x32xf32> -> vector<2x32xf32>
    %64 = arith.addf %62, %63 : vector<2x32xf32>
    %65 = arith.addf %64, %12 : vector<2x32xf32>
    %66 = math.tanh %65 : vector<2x32xf32>
    %c4_i32 = arith.constant 4 : i32
    %c0_40 = arith.constant 0 : index
    %c0_41 = arith.constant 0 : index
    %67 = vector.load %arg11[%c0_40, %c0_41] : memref<2x32xf32, #tpu.memory_space<vmem>>, vector<2x32xf32>
    tpu.vector_store %arg11[%c0_40, %c0_41], %61 {strides = array<i32>} : memref<2x32xf32, #tpu.memory_space<vmem>>, vector<2x32xf32>,
    %c0_42 = arith.constant 0 : index
    %c0_43 = arith.constant 0 : index
    %68 = vector.load %arg12[%c0_42, %c0_43] : memref<2x32xf32, #tpu.memory_space<vmem>>, vector<2x32xf32>
    tpu.vector_store %arg12[%c0_42, %c0_43], %66 {strides = array<i32>} : memref<2x32xf32, #tpu.memory_space<vmem>>, vector<2x32xf32>,
    %c1_i32_44 = arith.constant 1 : i32
    %69 = arith.cmpi eq, %arg0, %c1_i32_44 : i32
    %70 = arith.extui %69 : i1 to i32
    %c0_i32_45 = arith.constant 0 : i32
    %71 = arith.cmpi ne, %70, %c0_i32_45 : i32
    scf.if %71 {
      %c0_46 = arith.constant 0 : index
      %c0_47 = arith.constant 0 : index
      %72 = vector.load %arg8[%c0_46, %c0_47] : memref<32x128xf32, #tpu.memory_space<vmem>>, vector<32x128xf32>
      %cst_48 = arith.constant dense<0.000000e+00> : vector<2x128xf32>
      %73 = tpu.matmul %66, %72, %cst_48 {dimension_numbers = #tpu.dot_dimension_numbers<[1], [0], [0], [1], [0, 0, 1, 1], [], []>} : vector<2x32xf32>, vector<32x128xf32>, vector<2x128xf32> -> vector<2x128xf32>
      %c0_49 = arith.constant 0 : index
      %c0_50 = arith.constant 0 : index
      %74 = vector.load %arg9[%c0_49, %c0_50] : memref<1x128xf32, #tpu.memory_space<vmem>>, vector<1x128xf32>
      %75 = vector.broadcast %74 : vector<1x128xf32> to vector<2x128xf32>
      %76 = arith.addf %73, %75 : vector<2x128xf32>
      %c0_51 = arith.constant 0 : index
      %c0_52 = arith.constant 0 : index
      %77 = vector.load %arg10[%c0_51, %c0_52] : memref<2x128xf32, #tpu.memory_space<vmem>>, vector<2x128xf32>
      tpu.vector_store %arg10[%c0_51, %c0_52], %76 {strides = array<i32>} : memref<2x128xf32, #tpu.memory_space<vmem>>, vector<2x128xf32>,
    } else {
    }
    return
  }
  func.func @transform_0(%arg0: i32) -> (i32, i32, i32) {
    %c0_i32 = arith.constant 0 : i32
    %c0_i32_0 = arith.constant 0 : i32
    %c0_i32_1 = arith.constant 0 : i32
    return %arg0, %c0_i32, %c0_i32_0 : i32, i32, i32
  }
  func.func @transform_1(%arg0: i32) -> (i32, i32) {
    %c0_i32 = arith.constant 0 : i32
    %c0_i32_0 = arith.constant 0 : i32
    %c0_i32_1 = arith.constant 0 : i32
    return %c0_i32, %c0_i32_0 : i32, i32
  }
  func.func @transform_2(%arg0: i32) -> (i32, i32) {
    %c0_i32 = arith.constant 0 : i32
    %c0_i32_0 = arith.constant 0 : i32
    %c0_i32_1 = arith.constant 0 : i32
    return %c0_i32, %c0_i32_0 : i32, i32
  }
  func.func @transform_3(%arg0: i32) -> (i32, i32) {
    %c0_i32 = arith.constant 0 : i32
    %c0_i32_0 = arith.constant 0 : i32
    %c0_i32_1 = arith.constant 0 : i32
    return %c0_i32, %c0_i32_0 : i32, i32
  }
  func.func @transform_4(%arg0: i32) -> (i32, i32) {
    %c0_i32 = arith.constant 0 : i32
    %c0_i32_0 = arith.constant 0 : i32
    %c0_i32_1 = arith.constant 0 : i32
    return %c0_i32, %c0_i32_0 : i32, i32
  }
  func.func @transform_5(%arg0: i32) -> (i32, i32) {
    %c0_i32 = arith.constant 0 : i32
    %c0_i32_0 = arith.constant 0 : i32
    %c0_i32_1 = arith.constant 0 : i32
    return %c0_i32, %c0_i32_0 : i32, i32
  }
  func.func @transform_6(%arg0: i32) -> (i32, i32) {
    %c0_i32 = arith.constant 0 : i32
    %c0_i32_0 = arith.constant 0 : i32
    %c0_i32_1 = arith.constant 0 : i32
    return %c0_i32, %c0_i32_0 : i32, i32
  }
  func.func @transform_7(%arg0: i32) -> (i32, i32) {
    %c0_i32 = arith.constant 0 : i32
    %c0_i32_0 = arith.constant 0 : i32
    %c0_i32_1 = arith.constant 0 : i32
    return %c0_i32, %c0_i32_0 : i32, i32
  }
  func.func @transform_8(%arg0: i32) -> (i32, i32) {
    %c0_i32 = arith.constant 0 : i32
    %c0_i32_0 = arith.constant 0 : i32
    %c0_i32_1 = arith.constant 0 : i32
    return %c0_i32, %c0_i32_0 : i32, i32
  }
  func.func @transform_9(%arg0: i32) -> (i32, i32) {
    %c0_i32 = arith.constant 0 : i32
    %c0_i32_0 = arith.constant 0 : i32
    %c0_i32_1 = arith.constant 0 : i32
    return %c0_i32, %c0_i32_0 : i32, i32
  }
}

</mosaic_0001>

<llo_original>
// kernel: tpu_custom_call.1
$region0: #{tpu_custom_call.1}
  #allocation0 [shape = 'u32[]', space=smem, size = 0x4, offset = 0x4, fixed_abs, tag = 'smem constant byte address 0x4 - core index']
  #allocation1 [shape = 'u32[144,128]{1,0:T(1,128)}', space=vmem, size = 0x12000, scoped, tag = 'internal scratch']
  #allocation2 [shape = 'f32[2,32]{1,0:T(2,128)}', space=vmem, size = 0x400, scoped, tag = 'scratch operand']
  #allocation3 [shape = 'f32[2,32]{1,0:T(2,128)}', space=vmem, size = 0x400, scoped, tag = 'scratch operand']
  %s0 = inlined_call_operand.hbm [shape: f32[8,2,8], index: 0, kind: input, shape index: {}]
  %s1 = inlined_call_operand.hbm [shape: f32[8,32], index: 1, kind: input, shape index: {}]
  %s2 = inlined_call_operand.hbm [shape: f32[32,32], index: 2, kind: input, shape index: {}]
  %s3 = inlined_call_operand.vmem [shape: f32[1,32], index: 3, kind: input, shape index: {}]
  %s4 = inlined_call_operand.hbm [shape: f32[32,32], index: 4, kind: input, shape index: {}]
  %s5 = inlined_call_operand.hbm [shape: f32[32,32], index: 5, kind: input, shape index: {}]
  %s6 = inlined_call_operand.vmem [shape: f32[1,32], index: 6, kind: input, shape index: {}]
  %s7 = inlined_call_operand.hbm [shape: f32[32,128], index: 7, kind: input, shape index: {}]
  %s8 = inlined_call_operand.vmem [shape: f32[1,128], index: 8, kind: input, shape index: {}]
  %s9 = inlined_call_operand.hbm [shape: f32[2,128], index: 9, kind: output, shape index: {}]
  %s10 = sld [smem:[#allocation0]]
  $region101: #{tpu_custom_call.1} parent=0
    _
  %s12 = ssub.s32 1, %s10
  %s13 = scalar_select 0, %s12, %s10
  $region1: #{tpu_custom_call.1} parent=0
    #allocation4 [shape = 'u8[8192]{0}', space=vmem, size = 0x2000, scoped, tag = 'input window, operand 0']
    #allocation5 [shape = 's32[2]{0}', space=sflag, size = 0x8, scoped, tag = 'scoped memory for tpu_custom_call.1']
    #allocation6 [shape = 's32[2]{0}', space=sflag, size = 0x8, scoped, tag = 'scoped memory for tpu_custom_call.1']
    #allocation7 [shape = 'u8[4096]{0}', space=vmem, size = 0x1000, scoped, tag = 'input window, operand 1, single buffered']
    #allocation8 [shape = 's32[1]{0}', space=sflag, size = 0x4, scoped, tag = 'scoped memory for tpu_custom_call.1']
    #allocation9 [shape = 'u8[16384]{0}', space=vmem, size = 0x4000, scoped, tag = 'input window, operand 2, single buffered']
    #allocation10 [shape = 'u8[16384]{0}', space=vmem, size = 0x4000, scoped, tag = 'input window, operand 4, single buffered']
    #allocation11 [shape = 's32[1]{0}', space=sflag, size = 0x4, scoped, tag = 'scoped memory for tpu_custom_call.1']
    #allocation12 [shape = 'u8[16384]{0}', space=vmem, size = 0x4000, scoped, tag = 'input window, operand 5, single buffered']
    #allocation13 [shape = 'u8[16384]{0}', space=vmem, size = 0x4000, scoped, tag = 'input window, operand 7, single buffered']
    #allocation14 [shape = 's32[1]{0}', space=sflag, size = 0x4, scoped, tag = 'scoped memory for tpu_custom_call.1']
    #allocation15 [shape = 'u8[1024]{0}', space=vmem, size = 0x400, scoped, tag = 'output window, operand 0, single buffered']
    %14 = vsyncpa [#allocation5], 0
    %s15 = scalar_lea.sflag [#allocation5], 1
    %16 = vsyncpa %s15, 0
    %17 = vsyncpa [#allocation8], 0
    %18 = vsyncpa [#allocation11], 0
    %19 = vsyncpa [#allocation14], 0
    %20 = vsyncpa [#allocation6], 0
    loop: start=0, step=1, limit=4
    $region2: #{tpu_custom_call.1} parent=1 // loop_pre_header
      _
    $region3: #{tpu_custom_call.1} parent=1 // loop_header
      %s22 = sphi 0, %s26
      %p23 = scmp.ge.s32.totalorder %s22, 4
      %s32 = sphi 0, %s34
      %s35 = sphi 0, %s32
      %s36 = sphi 0, %s35
      %s52 = sphi 0, %s36
      %s56 = sphi 0, %s56
      %s58 = sphi 0, %s56
      %s59 = sphi 0, %s58
      %s73 = sphi 0, %s59
      %s77 = sphi 0, %s77
      %s79 = sphi 0, %s77
      %s80 = sphi 0, %s79
      %s94 = sphi 0, %s80
      %s98 = sphi 0, %s98
      %s100 = sphi 0, %s98
      %s101 = sphi 0, %s100
      %s115 = sphi 0, %s101
      %s119 = sphi 0, %s119
      %s121 = sphi 0, %s119
      %s122 = sphi 0, %s121
      %s136 = sphi 0, %s122
      %s140 = sphi 0, %s140
      %s142 = sphi 0, %s140
      %s143 = sphi 0, %s142
      %s157 = sphi 0, %s143
      %s161 = sphi 0, %s161
      %s163 = sphi 0, %s161
      %s164 = sphi 0, %s163
      %s178 = sphi 0, %s164
      %s182 = sphi 0, %s182
      %s184 = sphi 0, %s182
      %s185 = sphi 0, %s184
      %s199 = sphi 0, %s185
      %s203 = sphi 0, %s203
      %s205 = sphi 0, %s203
      %s206 = sphi 0, %s205
      %s220 = sphi 0, %s206
      %s224 = sphi 0, %s224
      %s226 = sphi 0, %s224
      %s227 = sphi 0, %s226
      %s241 = sphi 0, %s227
    $region4: #{tpu_custom_call.1} parent=1 // loop_header_branch
      %25 = sbr.rel (%p23) target = $region8
    $region5: #{tpu_custom_call.1} parent=1 // loop_body
      %s27 = ssub.s32 %s22, 1
      %s28 = ssub.s32 %s22, 2
      %s29 = sadd.s32 %s22, 1
      %s30 = ssub.s32 %s22, %s29
      %p31 = scmp.eq.s32.totalorder %s30, 0
      %s33 = sadd.s32 %s32, 1
      %s34 = scalar_select %p31, %s32, %s33
      %p37 = pneg %p31
      %p38 = scmp.eq.s32.totalorder %s22, 1
      %p39 = por %p37, %p38
      %p40 = scmp.ne.s32.totalorder %s32, %s35
      %p41 = scmp.eq.s32.totalorder %s22, 0
      %p42 = por %p40, %p41
      %p43 = scmp.ne.s32.totalorder %s32, %s35
      %p44 = scmp.eq.s32.totalorder %s27, 1
      %p45 = por %p43, %p44
      %p46 = scmp.ne.s32.totalorder %s35, %s36
      %p47 = scmp.eq.s32.totalorder %s27, 0
      %p48 = por %p46, %p47
      %p49 = scmp.ne.s32.totalorder %s35, %s36
      %p50 = scmp.eq.s32.totalorder %s28, 1
      %p51 = por %p49, %p50
      %p53 = scmp.ne.s32.totalorder %s36, %s52
      %p54 = scmp.eq.s32.totalorder %s28, 0
      %p55 = por %p53, %p54
      %s57 = sadd.s32 %s56, 1
      %p60 = scmp.eq.s32.totalorder %s22, 1
      %p61 = scmp.ne.s32.totalorder %s56, %s58
      %p62 = scmp.eq.s32.totalorder %s22, 0
      %p63 = por %p61, %p62
      %p64 = scmp.ne.s32.totalorder %s56, %s58
      %p65 = scmp.eq.s32.totalorder %s27, 1
      %p66 = por %p64, %p65
      %p67 = scmp.ne.s32.totalorder %s58, %s59
      %p68 = scmp.eq.s32.totalorder %s27, 0
      %p69 = por %p67, %p68
      %p70 = scmp.ne.s32.totalorder %s58, %s59
      %p71 = scmp.eq.s32.totalorder %s28, 1
      %p72 = por %p70, %p71
      %p74 = scmp.ne.s32.totalorder %s59, %s73
      %p75 = scmp.eq.s32.totalorder %s28, 0
      %p76 = por %p74, %p75
      %s78 = sadd.s32 %s77, 1
      %p81 = scmp.eq.s32.totalorder %s22, 1
      %p82 = scmp.ne.s32.totalorder %s77, %s79
      %p83 = scmp.eq.s32.totalorder %s22, 0
      %p84 = por %p82, %p83
      %p85 = scmp.ne.s32.totalorder %s77, %s79
      %p86 = scmp.eq.s32.totalorder %s27, 1
      %p87 = por %p85, %p86
      %p88 = scmp.ne.s32.totalorder %s79, %s80
      %p89 = scmp.eq.s32.totalorder %s27, 0
      %p90 = por %p88, %p89
      %p91 = scmp.ne.s32.totalorder %s79, %s80
      %p92 = scmp.eq.s32.totalorder %s28, 1
      %p93 = por %p91, %p92
      %p95 = scmp.ne.s32.totalorder %s80, %s94
      %p96 = scmp.eq.s32.totalorder %s28, 0
      %p97 = por %p95, %p96
      %s99 = sadd.s32 %s98, 1
      %p102 = scmp.eq.s32.totalorder %s22, 1
      %p103 = scmp.ne.s32.totalorder %s98, %s100
      %p104 = scmp.eq.s32.totalorder %s22, 0
      %p105 = por %p103, %p104
      %p106 = scmp.ne.s32.totalorder %s98, %s100
      %p107 = scmp.eq.s32.totalorder %s27, 1
      %p108 = por %p106, %p107
      %p109 = scmp.ne.s32.totalorder %s100, %s101
      %p110 = scmp.eq.s32.totalorder %s27, 0
      %p111 = por %p109, %p110
      %p112 = scmp.ne.s32.totalorder %s100, %s101
      %p113 = scmp.eq.s32.totalorder %s28, 1
      %p114 = por %p112, %p113
      %p116 = scmp.ne.s32.totalorder %s101, %s115
      %p117 = scmp.eq.s32.totalorder %s28, 0
      %p118 = por %p116, %p117
      %s120 = sadd.s32 %s119, 1
      %p123 = scmp.eq.s32.totalorder %s22, 1
      %p124 = scmp.ne.s32.totalorder %s119, %s121
      %p125 = scmp.eq.s32.totalorder %s22, 0
      %p126 = por %p124, %p125
      %p127 = scmp.ne.s32.totalorder %s119, %s121
      %p128 = scmp.eq.s32.totalorder %s27, 1
      %p129 = por %p127, %p128
      %p130 = scmp.ne.s32.totalorder %s121, %s122
      %p131 = scmp.eq.s32.totalorder %s27, 0
      %p132 = por %p130, %p131
      %p133 = scmp.ne.s32.totalorder %s121, %s122
      %p134 = scmp.eq.s32.totalorder %s28, 1
      %p135 = por %p133, %p134
      %p137 = scmp.ne.s32.totalorder %s122, %s136
      %p138 = scmp.eq.s32.totalorder %s28, 0
      %p139 = por %p137, %p138
      %s141 = sadd.s32 %s140, 1
      %p144 = scmp.eq.s32.totalorder %s22, 1
      %p145 = scmp.ne.s32.totalorder %s140, %s142
      %p146 = scmp.eq.s32.totalorder %s22, 0
      %p147 = por %p145, %p146
      %p148 = scmp.ne.s32.totalorder %s140, %s142
      %p149 = scmp.eq.s32.totalorder %s27, 1
      %p150 = por %p148, %p149
      %p151 = scmp.ne.s32.totalorder %s142, %s143
      %p152 = scmp.eq.s32.totalorder %s27, 0
      %p153 = por %p151, %p152
      %p154 = scmp.ne.s32.totalorder %s142, %s143
      %p155 = scmp.eq.s32.totalorder %s28, 1
      %p156 = por %p154, %p155
      %p158 = scmp.ne.s32.totalorder %s143, %s157
      %p159 = scmp.eq.s32.totalorder %s28, 0
      %p160 = por %p158, %p159
      %s162 = sadd.s32 %s161, 1
      %p165 = scmp.eq.s32.totalorder %s22, 1
      %p166 = scmp.ne.s32.totalorder %s161, %s163
      %p167 = scmp.eq.s32.totalorder %s22, 0
      %p168 = por %p166, %p167
      %p169 = scmp.ne.s32.totalorder %s161, %s163
      %p170 = scmp.eq.s32.totalorder %s27, 1
      %p171 = por %p169, %p170
      %p172 = scmp.ne.s32.totalorder %s163, %s164
      %p173 = scmp.eq.s32.totalorder %s27, 0
      %p174 = por %p172, %p173
      %p175 = scmp.ne.s32.totalorder %s163, %s164
      %p176 = scmp.eq.s32.totalorder %s28, 1
      %p177 = por %p175, %p176
      %p179 = scmp.ne.s32.totalorder %s164, %s178
      %p180 = scmp.eq.s32.totalorder %s28, 0
      %p181 = por %p179, %p180
      %s183 = sadd.s32 %s182, 1
      %p186 = scmp.eq.s32.totalorder %s22, 1
      %p187 = scmp.ne.s32.totalorder %s182, %s184
      %p188 = scmp.eq.s32.totalorder %s22, 0
      %p189 = por %p187, %p188
      %p190 = scmp.ne.s32.totalorder %s182, %s184
      %p191 = scmp.eq.s32.totalorder %s27, 1
      %p192 = por %p190, %p191
      %p193 = scmp.ne.s32.totalorder %s184, %s185
      %p194 = scmp.eq.s32.totalorder %s27, 0
      %p195 = por %p193, %p194
      %p196 = scmp.ne.s32.totalorder %s184, %s185
      %p197 = scmp.eq.s32.totalorder %s28, 1
      %p198 = por %p196, %p197
      %p200 = scmp.ne.s32.totalorder %s185, %s199
      %p201 = scmp.eq.s32.totalorder %s28, 0
      %p202 = por %p200, %p201
      %s204 = sadd.s32 %s203, 1
      %p207 = scmp.eq.s32.totalorder %s22, 1
      %p208 = scmp.ne.s32.totalorder %s203, %s205
      %p209 = scmp.eq.s32.totalorder %s22, 0
      %p210 = por %p208, %p209
      %p211 = scmp.ne.s32.totalorder %s203, %s205
      %p212 = scmp.eq.s32.totalorder %s27, 1
      %p213 = por %p211, %p212
      %p214 = scmp.ne.s32.totalorder %s205, %s206
      %p215 = scmp.eq.s32.totalorder %s27, 0
      %p216 = por %p214, %p215
      %p217 = scmp.ne.s32.totalorder %s205, %s206
      %p218 = scmp.eq.s32.totalorder %s28, 1
      %p219 = por %p217, %p218
      %p221 = scmp.ne.s32.totalorder %s206, %s220
      %p222 = scmp.eq.s32.totalorder %s28, 0
      %p223 = por %p221, %p222
      %s225 = sadd.s32 %s224, 1
      %p228 = scmp.eq.s32.totalorder %s22, 1
      %p229 = scmp.ne.s32.totalorder %s224, %s226
      %p230 = scmp.eq.s32.totalorder %s22, 0
      %p231 = por %p229, %p230
      %p232 = scmp.ne.s32.totalorder %s224, %s226
      %p233 = scmp.eq.s32.totalorder %s27, 1
      %p234 = por %p232, %p233
      %p235 = scmp.ne.s32.totalorder %s226, %s227
      %p236 = scmp.eq.s32.totalorder %s27, 0
      %p237 = por %p235, %p236
      %p238 = scmp.ne.s32.totalorder %s226, %s227
      %p239 = scmp.eq.s32.totalorder %s28, 1
      %p240 = por %p238, %p239
      %p242 = scmp.ne.s32.totalorder %s227, %s241
      %p243 = scmp.eq.s32.totalorder %s28, 0
      %p244 = por %p242, %p243
      %p245 = scmp.le.s32.totalorder 1, %s22
      %p246 = scmp.lt.s32.totalorder %s22, 3
      %p247 = pnand %p245, %p246
      %p248 = pneg %p247
      // Predicated region
      $region9: #{tpu_custom_call.1} parent=5 // pred_check
        _
      $region10: #{tpu_custom_call.1} parent=5 // pred_check_branch
        %250 = sbr.rel (%p247) target = $region12
      $region11: #{tpu_custom_call.1} parent=5 // pred_region
        %s251 = ssub.s32 %s22, 1
        // Predicated region
        $region13: #{tpu_custom_call.1} parent=11 // pred_check
          %p252 = pneg %p69
        $region14: #{tpu_custom_call.1} parent=11 // pred_check_branch
          %254 = sbr.rel (%p252) target = $region16
        $region15: #{tpu_custom_call.1} parent=11 // pred_region
          %s256 = ssub.s32 128, 128
          %257 = vsyncadd [#allocation8], %s256
          %s259 = sshll.u32 [#allocation7], 4
          %s260 = int_to_ptr.vmem [resolvable:$true] %s259
          %262 = dma.hbm_to_vmem [thread:$0]  %s1, 128, %s260, [#allocation8]
        $region16: #{tpu_custom_call.1} parent=11 // pred_fallthru
          _
        // Predicated region
        $region17: #{tpu_custom_call.1} parent=11 // pred_check
          %p263 = pneg %p90
        $region18: #{tpu_custom_call.1} parent=11 // pred_check_branch
          %265 = sbr.rel (%p263) target = $region20
        $region19: #{tpu_custom_call.1} parent=11 // pred_region
          %s267 = ssub.s32 512, 512
          %268 = vsyncadd [#allocation8], %s267
          %s269 = sshll.u32 [#allocation9], 4
          %s270 = int_to_ptr.vmem [resolvable:$true] %s269
          %275 = dma.hbm_to_vmem [thread:$0]  %s2, 512, %s270, [#allocation8], 128, 128, 8
        $region20: #{tpu_custom_call.1} parent=11 // pred_fallthru
          _
        // Predicated region
        $region21: #{tpu_custom_call.1} parent=11 // pred_check
          %p276 = pneg %p111
        $region22: #{tpu_custom_call.1} parent=11 // pred_check_branch
          %278 = sbr.rel (%p276) target = $region24
        $region23: #{tpu_custom_call.1} parent=11 // pred_region
          _
        $region24: #{tpu_custom_call.1} parent=11 // pred_fallthru
          _
        // Predicated region
        $region25: #{tpu_custom_call.1} parent=11 // pred_check
          %p279 = pneg %p132
        $region26: #{tpu_custom_call.1} parent=11 // pred_check_branch
          %281 = sbr.rel (%p279) target = $region28
        $region27: #{tpu_custom_call.1} parent=11 // pred_region
          %s283 = ssub.s32 512, 512
          %284 = vsyncadd [#allocation11], %s283
          %s285 = sshll.u32 [#allocation10], 4
          %s286 = int_to_ptr.vmem [resolvable:$true] %s285
          %291 = dma.hbm_to_vmem [thread:$0]  %s4, 512, %s286, [#allocation11], 128, 128, 8
        $region28: #{tpu_custom_call.1} parent=11 // pred_fallthru
          _
        // Predicated region
        $region29: #{tpu_custom_call.1} parent=11 // pred_check
          %p292 = pneg %p153
        $region30: #{tpu_custom_call.1} parent=11 // pred_check_branch
          %294 = sbr.rel (%p292) target = $region32
        $region31: #{tpu_custom_call.1} parent=11 // pred_region
          %s296 = ssub.s32 512, 512
          %297 = vsyncadd [#allocation11], %s296
          %s298 = sshll.u32 [#allocation12], 4
          %s299 = int_to_ptr.vmem [resolvable:$true] %s298
          %304 = dma.hbm_to_vmem [thread:$0]  %s5, 512, %s299, [#allocation11], 128, 128, 8
        $region32: #{tpu_custom_call.1} parent=11 // pred_fallthru
          _
        // Predicated region
        $region33: #{tpu_custom_call.1} parent=11 // pred_check
          %p305 = pneg %p174
        $region34: #{tpu_custom_call.1} parent=11 // pred_check_branch
          %307 = sbr.rel (%p305) target = $region36
        $region35: #{tpu_custom_call.1} parent=11 // pred_region
          _
        $region36: #{tpu_custom_call.1} parent=11 // pred_fallthru
          _
        // Predicated region
        $region37: #{tpu_custom_call.1} parent=11 // pred_check
          %p308 = pneg %p195
        $region38: #{tpu_custom_call.1} parent=11 // pred_check_branch
          %310 = sbr.rel (%p308) target = $region40
        $region39: #{tpu_custom_call.1} parent=11 // pred_region
          %s312 = ssub.s32 512, 512
          %313 = vsyncadd [#allocation14], %s312
          %s314 = sshll.u32 [#allocation13], 4
          %s315 = int_to_ptr.vmem [resolvable:$true] %s314
          %320 = dma.hbm_to_vmem [thread:$0]  %s7, 512, %s315, [#allocation14], 128, 128, 8
        $region40: #{tpu_custom_call.1} parent=11 // pred_fallthru
          _
        // Predicated region
        $region41: #{tpu_custom_call.1} parent=11 // pred_check
          %p321 = pneg %p216
        $region42: #{tpu_custom_call.1} parent=11 // pred_check_branch
          %323 = sbr.rel (%p321) target = $region44
        $region43: #{tpu_custom_call.1} parent=11 // pred_region
          _
        $region44: #{tpu_custom_call.1} parent=11 // pred_fallthru
          _
      $region12: #{tpu_custom_call.1} parent=5 // pred_fallthru
        _
      %p324 = scmp.lt.s32.totalorder %s22, 2
      // Predicated region
      $region45: #{tpu_custom_call.1} parent=5 // pred_check
        %p325 = pneg %p324
      $region46: #{tpu_custom_call.1} parent=5 // pred_check_branch
        %327 = sbr.rel (%p325) target = $region48
      $region47: #{tpu_custom_call.1} parent=5 // pred_region
        // Predicated region
        $region49: #{tpu_custom_call.1} parent=47 // pred_check
          %p328 = pneg %p42
        $region50: #{tpu_custom_call.1} parent=47 // pred_check_branch
          %330 = sbr.rel (%p328) target = $region52
        $region51: #{tpu_custom_call.1} parent=47 // pred_region
          %s331 = sand.u32 %s32, 1
          %s332 = scalar_lea.sflag [#allocation5], %s331
          %s333 = sand.u32 %s32, 1
          %s334 = smul.addr %s333, 8
          %s335 = scalar_lea.vmem [#allocation4], %s334
          %s336 = smul.u32 4, %s22
          %s338 = ssub.s32 128, 128
          %339 = vsyncadd %s332, %s338
          %s340 = smul.addr %s336, 32
          %s341 = scalar_lea.hbm %s0, %s340
          %s342 = sshll.u32 %s335, 4
          %s343 = int_to_ptr.vmem [resolvable:$true] %s342
          %348 = dma.hbm_to_vmem [thread:$0]  %s341, 128, %s343, %s332, 32, 32, 2
        $region52: #{tpu_custom_call.1} parent=47 // pred_fallthru
          _
      $region48: #{tpu_custom_call.1} parent=5 // pred_fallthru
        _
      %p349 = scmp.le.s32.totalorder 1, %s22
      %p350 = scmp.lt.s32.totalorder %s22, 3
      %p351 = pnand %p349, %p350
      %p352 = pneg %p351
      // Predicated region
      $region53: #{tpu_custom_call.1} parent=5 // pred_check
        _
      $region54: #{tpu_custom_call.1} parent=5 // pred_check_branch
        %354 = sbr.rel (%p351) target = $region56
      $region55: #{tpu_custom_call.1} parent=5 // pred_region
        %s355 = ssub.s32 %s22, 1
        %s356 = sand.u32 %s35, 1
        %s357 = scalar_lea.sflag [#allocation5], %s356
        %s358 = sand.u32 %s35, 1
        %s359 = smul.addr %s358, 8
        %s360 = scalar_lea.vmem [#allocation4], %s359
        // Predicated region
        $region57: #{tpu_custom_call.1} parent=55 // pred_check
          %p361 = pneg %p48
        $region58: #{tpu_custom_call.1} parent=55 // pred_check_branch
          %363 = sbr.rel (%p361) target = $region60
        $region59: #{tpu_custom_call.1} parent=55 // pred_region
          %364 = dma.done %s357, 128
        $region60: #{tpu_custom_call.1} parent=55 // pred_fallthru
          _
        // Predicated region
        $region61: #{tpu_custom_call.1} parent=55 // pred_check
          %p365 = pneg %p69
        $region62: #{tpu_custom_call.1} parent=55 // pred_check_branch
          %367 = sbr.rel (%p365) target = $region64
        $region63: #{tpu_custom_call.1} parent=55 // pred_region
          %368 = dma.done [#allocation8], 128
        $region64: #{tpu_custom_call.1} parent=55 // pred_fallthru
          _
        // Predicated region
        $region65: #{tpu_custom_call.1} parent=55 // pred_check
          %p369 = pneg %p90
        $region66: #{tpu_custom_call.1} parent=55 // pred_check_branch
          %371 = sbr.rel (%p369) target = $region68
        $region67: #{tpu_custom_call.1} parent=55 // pred_region
          %372 = dma.done [#allocation8], 512
        $region68: #{tpu_custom_call.1} parent=55 // pred_fallthru
          _
        // Predicated region
        $region69: #{tpu_custom_call.1} parent=55 // pred_check
          %p373 = pneg %p132
        $region70: #{tpu_custom_call.1} parent=55 // pred_check_branch
          %375 = sbr.rel (%p373) target = $region72
        $region71: #{tpu_custom_call.1} parent=55 // pred_region
          %376 = dma.done [#allocation11], 512
        $region72: #{tpu_custom_call.1} parent=55 // pred_fallthru
          _
        // Predicated region
        $region73: #{tpu_custom_call.1} parent=55 // pred_check
          %p377 = pneg %p153
        $region74: #{tpu_custom_call.1} parent=55 // pred_check_branch
          %379 = sbr.rel (%p377) target = $region76
        $region75: #{tpu_custom_call.1} parent=55 // pred_region
          %380 = dma.done [#allocation11], 512
        $region76: #{tpu_custom_call.1} parent=55 // pred_fallthru
          _
        // Predicated region
        $region77: #{tpu_custom_call.1} parent=55 // pred_check
          %p381 = pneg %p195
        $region78: #{tpu_custom_call.1} parent=55 // pred_check_branch
          %383 = sbr.rel (%p381) target = $region80
        $region79: #{tpu_custom_call.1} parent=55 // pred_region
          %384 = dma.done [#allocation14], 512
        $region80: #{tpu_custom_call.1} parent=55 // pred_fallthru
          _
        %s385 = sand.u32 %s35, 1
        %s386 = scalar_lea.sflag [#allocation5], %s385
        %s387 = sand.u32 %s35, 1
        %s388 = smul.addr %s387, 8
        %s389 = scalar_lea.vmem [#allocation4], %s388
        %p390 = pneg %p48
        %p391 = pneg %p45
        %p392 = pneg %p69
        %p393 = pneg %p66
        %p394 = pneg %p90
        %p395 = pneg %p87
        %p396 = pneg %p111
        %p397 = pneg %p108
        %p398 = pneg %p132
        %p399 = pneg %p129
        %p400 = pneg %p153
        %p401 = pneg %p150
        %p402 = pneg %p174
        %p403 = pneg %p171
        %p404 = pneg %p195
        %p405 = pneg %p192
        %p406 = pneg %p216
        %p407 = pneg %p213
        %p408 = pneg %p237
        %p409 = pneg %p234
        %s410 = smul.u32 4, %s27
        %p411 = scmp.eq.s32.totalorder %s27, 0
        // Predicated region
        $region81: #{tpu_custom_call.1} parent=55 // pred_check
          %p412 = pneg %p411
        $region82: #{tpu_custom_call.1} parent=55 // pred_check_branch
          %414 = sbr.rel (%p412) target = $region84
        $region83: #{tpu_custom_call.1} parent=55 // pred_region
          %vm415 = vcmask 254976
          %416 = vst.msk [vmem:[#allocation2] sm:$0x3] %vm415, 0.0
          %417 = vst.msk [vmem:[#allocation3] sm:$0x3] %vm415, 0.0
        $region84: #{tpu_custom_call.1} parent=55 // pred_fallthru
          _
        %v418 = vld [vmem:[#allocation7] sm:$0xff]
        %v419 = vld [vmem:[#allocation9] sm:$0xff]
        %v420 = vld [vmem:[#allocation9 + $0x8] sm:$0xff]
        %v421 = vld [vmem:[#allocation9 + $0x10] sm:$0xff]
        %v422 = vld [vmem:[#allocation9 + $0x18] sm:$0xff]
        %v423 = vld [vmem:[#allocation10] sm:$0xff]
        %v424 = vld [vmem:[#allocation10 + $0x8] sm:$0xff]
        %v425 = vld [vmem:[#allocation10 + $0x10] sm:$0xff]
        %v426 = vld [vmem:[#allocation10 + $0x18] sm:$0xff]
        %v427 = vld [vmem:[#allocation12] sm:$0xff]
        %v428 = vld [vmem:[#allocation12 + $0x8] sm:$0xff]
        %v429 = vld [vmem:[#allocation12 + $0x10] sm:$0xff]
        %v430 = vld [vmem:[#allocation12 + $0x18] sm:$0xff]
        %v431 = vld [vmem:[%s3] sm:$0x1]
        %v433 = vlaneseq
        %v434 = vshrl.u32 %v433, 7
        %v435 = vsub.s32 0, %v434
        %v436 = vrot.slane %v431, %v435
        %v438 = vld [vmem:[%s6] sm:$0x1]
        %v440 = vlaneseq
        %v441 = vshrl.u32 %v440, 7
        %v442 = vsub.s32 0, %v441
        %v443 = vrot.slane %v438, %v442
        %v445 = vld [vmem:[#allocation2] sm:$0x3]
        %v446 = vld [vmem:[#allocation3] sm:$0x3]
        %v447 = vld [vmem:[%s360] sm:$0x3]
        %vm448 = vcmask 64512
        %v450 = vsel %vm448, %v447, 0
        %452 = vmatprep.subr.mxu0 0.0
        %453 = vmatpush1.msra.mxu0 0.0
        %454 = vmatprep.subr.mxu0 0.0
        %455 = vmatpush1.msra.mxu0 0.0
        %456 = vmatprep.subr.mxu0 0.0
        %457 = vmatpush1.msra.mxu0 0.0
        %458 = vmatprep.subr.mxu0 0.0
        %459 = vmatpush1.msra.mxu0 0.0
        %460 = vmatprep.subr.mxu0 0.0
        %461 = vmatpush1.msra.mxu0 0.0
        %462 = vmatprep.subr.mxu0 0.0
        %463 = vmatpush1.msra.mxu0 0.0
        %464 = vmatprep.subr.mxu0 0.0
        %465 = vmatpush1.msra.mxu0 0.0
        %466 = vmatprep.subr.mxu0 0.0
        %467 = vmatpush1.msra.mxu0 0.0
        %468 = vmatprep.subr.mxu0 0.0
        %469 = vmatpush1.msra.mxu0 0.0
        %470 = vmatprep.subr.mxu0 0.0
        %471 = vmatpush1.msra.mxu0 0.0
        %472 = vmatprep.subr.mxu0 0.0
        %473 = vmatpush1.msra.mxu0 0.0
        %474 = vmatprep.subr.mxu0 0.0
        %475 = vmatpush1.msra.mxu0 0.0
        %476 = vmatprep.subr.mxu0 0.0
        %477 = vmatpush1.msra.mxu0 0.0
        %478 = vmatprep.subr.mxu0 0.0
        %479 = vmatpush1.msra.mxu0 0.0
        %480 = vmatprep.subr.mxu0 0.0
        %481 = vmatpush1.msra.mxu0 0.0
        %482 = vmatprep.subr.mxu0 0.0
        %483 = vmatpush1.msra.mxu0 %v418
        %484 = vmatprep.subr.mxu0 0.0
        %485 = vmatpush2.msra.mxu0 0.0
        %486 = vmatprep.subr.mxu0 0.0
        %487 = vmatpush2.msra.mxu0 0.0
        %488 = vmatprep.subr.mxu0 0.0
        %489 = vmatpush2.msra.mxu0 0.0
        %490 = vmatprep.subr.mxu0 0.0
        %491 = vmatpush2.msra.mxu0 0.0
        %492 = vmatprep.subr.mxu0 0.0
        %493 = vmatpush2.msra.mxu0 0.0
        %494 = vmatprep.subr.mxu0 0.0
        %495 = vmatpush2.msra.mxu0 0.0
        %496 = vmatprep.subr.mxu0 0.0
        %497 = vmatpush2.msra.mxu0 0.0
        %498 = vmatprep.subr.mxu0 0.0
        %499 = vmatpush2.msra.mxu0 0.0
        %500 = vmatprep.subr.mxu0 0.0
        %501 = vmatpush2.msra.mxu0 0.0
        %502 = vmatprep.subr.mxu0 0.0
        %503 = vmatpush2.msra.mxu0 0.0
        %504 = vmatprep.subr.mxu0 0.0
        %505 = vmatpush2.msra.mxu0 0.0
        %506 = vmatprep.subr.mxu0 0.0
        %507 = vmatpush2.msra.mxu0 0.0
        %508 = vmatprep.subr.mxu0 0.0
        %509 = vmatpush2.msra.mxu0 0.0
        %510 = vmatprep.subr.mxu0 0.0
        %511 = vmatpush2.msra.mxu0 0.0
        %512 = vmatprep.subr.mxu0 0.0
        %513 = vmatpush2.msra.mxu0 0.0
        %514 = vmatprep.subr.mxu0 0.0
        %515 = vmatpush2.msra.mxu0 0.0
        %516 = vmatprep.mubr.f32.mxu0 0.0
        %517 = vmatmul.mubr.f32.gmra.mxu0 %v450
        %v518 = vpop.f32.mrf.mxu0
        %v519 = vadd.f32 %v436, %v518
        %v520 = vpop.f32.mrf.mxu0
        %521 = vdwg.mxu0
        %vm522 = vcmask 261120
        %v524 = vsel %vm522, %v445, 0
        %526 = vmatprep.subr.mxu0 0.0
        %527 = vmatpush1.msra.mxu0 0.0
        %528 = vmatprep.subr.mxu0 0.0
        %529 = vmatpush1.msra.mxu0 0.0
        %530 = vmatprep.subr.mxu0 0.0
        %531 = vmatpush1.msra.mxu0 0.0
        %532 = vmatprep.subr.mxu0 0.0
        %533 = vmatpush1.msra.mxu0 0.0
        %534 = vmatprep.subr.mxu0 0.0
        %535 = vmatpush1.msra.mxu0 0.0
        %536 = vmatprep.subr.mxu0 0.0
        %537 = vmatpush1.msra.mxu0 0.0
        %538 = vmatprep.subr.mxu0 0.0
        %539 = vmatpush1.msra.mxu0 0.0
        %540 = vmatprep.subr.mxu0 0.0
        %541 = vmatpush1.msra.mxu0 0.0
        %542 = vmatprep.subr.mxu0 0.0
        %543 = vmatpush1.msra.mxu0 0.0
        %544 = vmatprep.subr.mxu0 0.0
        %545 = vmatpush1.msra.mxu0 0.0
        %546 = vmatprep.subr.mxu0 0.0
        %547 = vmatpush1.msra.mxu0 0.0
        %548 = vmatprep.subr.mxu0 0.0
        %549 = vmatpush1.msra.mxu0 0.0
        %550 = vmatprep.subr.mxu0 0.0
        %551 = vmatpush1.msra.mxu0 %v422
        %552 = vmatprep.subr.mxu0 0.0
        %553 = vmatpush1.msra.mxu0 %v421
        %554 = vmatprep.subr.mxu0 0.0
        %555 = vmatpush1.msra.mxu0 %v420
        %556 = vmatprep.subr.mxu0 0.0
        %557 = vmatpush1.msra.mxu0 %v419
        %558 = vmatprep.subr.mxu0 0.0
        %559 = vmatpush2.msra.mxu0 0.0
        %560 = vmatprep.subr.mxu0 0.0
        %561 = vmatpush2.msra.mxu0 0.0
        %562 = vmatprep.subr.mxu0 0.0
        %563 = vmatpush2.msra.mxu0 0.0
        %564 = vmatprep.subr.mxu0 0.0
        %565 = vmatpush2.msra.mxu0 0.0
        %566 = vmatprep.subr.mxu0 0.0
        %567 = vmatpush2.msra.mxu0 0.0
        %568 = vmatprep.subr.mxu0 0.0
        %569 = vmatpush2.msra.mxu0 0.0
        %570 = vmatprep.subr.mxu0 0.0
        %571 = vmatpush2.msra.mxu0 0.0
        %572 = vmatprep.subr.mxu0 0.0
        %573 = vmatpush2.msra.mxu0 0.0
        %574 = vmatprep.subr.mxu0 0.0
        %575 = vmatpush2.msra.mxu0 0.0
        %576 = vmatprep.subr.mxu0 0.0
        %577 = vmatpush2.msra.mxu0 0.0
        %578 = vmatprep.subr.mxu0 0.0
        %579 = vmatpush2.msra.mxu0 0.0
        %580 = vmatprep.subr.mxu0 0.0
        %581 = vmatpush2.msra.mxu0 0.0
        %582 = vmatprep.subr.mxu0 0.0
        %583 = vmatpush2.msra.mxu0 0.0
        %584 = vmatprep.subr.mxu0 0.0
        %585 = vmatpush2.msra.mxu0 0.0
        %586 = vmatprep.subr.mxu0 0.0
        %587 = vmatpush2.msra.mxu0 0.0
        %588 = vmatprep.subr.mxu0 0.0
        %589 = vmatpush2.msra.mxu0 0.0
        %590 = vmatprep.mubr.f32.mxu0 0.0
        %591 = vmatmul.mubr.f32.gmra.mxu0 %v524
        %v592 = vpop.f32.mrf.mxu0
        %v593 = vadd.f32 0.0, %v592
        %v594 = vpop.f32.mrf.mxu0
        %595 = vdwg.mxu0
        %v596 = vadd.f32 %v519, %v593
        %v597 = vtanh.pop %v596
        %v599 = vsel %vm522, %v446, 0
        %601 = vmatprep.subr.mxu0 0.0
        %602 = vmatpush1.msra.mxu0 0.0
        %603 = vmatprep.subr.mxu0 0.0
        %604 = vmatpush1.msra.mxu0 0.0
        %605 = vmatprep.subr.mxu0 0.0
        %606 = vmatpush1.msra.mxu0 0.0
        %607 = vmatprep.subr.mxu0 0.0
        %608 = vmatpush1.msra.mxu0 0.0
        %609 = vmatprep.subr.mxu0 0.0
        %610 = vmatpush1.msra.mxu0 0.0
        %611 = vmatprep.subr.mxu0 0.0
        %612 = vmatpush1.msra.mxu0 0.0
        %613 = vmatprep.subr.mxu0 0.0
        %614 = vmatpush1.msra.mxu0 0.0
        %615 = vmatprep.subr.mxu0 0.0
        %616 = vmatpush1.msra.mxu0 0.0
        %617 = vmatprep.subr.mxu0 0.0
        %618 = vmatpush1.msra.mxu0 0.0
        %619 = vmatprep.subr.mxu0 0.0
        %620 = vmatpush1.msra.mxu0 0.0
        %621 = vmatprep.subr.mxu0 0.0
        %622 = vmatpush1.msra.mxu0 0.0
        %623 = vmatprep.subr.mxu0 0.0
        %624 = vmatpush1.msra.mxu0 0.0
        %625 = vmatprep.subr.mxu0 0.0
        %626 = vmatpush1.msra.mxu0 %v430
        %627 = vmatprep.subr.mxu0 0.0
        %628 = vmatpush1.msra.mxu0 %v429
        %629 = vmatprep.subr.mxu0 0.0
        %630 = vmatpush1.msra.mxu0 %v428
        %631 = vmatprep.subr.mxu0 0.0
        %632 = vmatpush1.msra.mxu0 %v427
        %633 = vmatprep.subr.mxu0 0.0
        %634 = vmatpush2.msra.mxu0 0.0
        %635 = vmatprep.subr.mxu0 0.0
        %636 = vmatpush2.msra.mxu0 0.0
        %637 = vmatprep.subr.mxu0 0.0
        %638 = vmatpush2.msra.mxu0 0.0
        %639 = vmatprep.subr.mxu0 0.0
        %640 = vmatpush2.msra.mxu0 0.0
        %641 = vmatprep.subr.mxu0 0.0
        %642 = vmatpush2.msra.mxu0 0.0
        %643 = vmatprep.subr.mxu0 0.0
        %644 = vmatpush2.msra.mxu0 0.0
        %645 = vmatprep.subr.mxu0 0.0
        %646 = vmatpush2.msra.mxu0 0.0
        %647 = vmatprep.subr.mxu0 0.0
        %648 = vmatpush2.msra.mxu0 0.0
        %649 = vmatprep.subr.mxu0 0.0
        %650 = vmatpush2.msra.mxu0 0.0
        %651 = vmatprep.subr.mxu0 0.0
        %652 = vmatpush2.msra.mxu0 0.0
        %653 = vmatprep.subr.mxu0 0.0
        %654 = vmatpush2.msra.mxu0 0.0
        %655 = vmatprep.subr.mxu0 0.0
        %656 = vmatpush2.msra.mxu0 0.0
        %657 = vmatprep.subr.mxu0 0.0
        %658 = vmatpush2.msra.mxu0 0.0
        %659 = vmatprep.subr.mxu0 0.0
        %660 = vmatpush2.msra.mxu0 0.0
        %661 = vmatprep.subr.mxu0 0.0
        %662 = vmatpush2.msra.mxu0 0.0
        %663 = vmatprep.subr.mxu0 0.0
        %664 = vmatpush2.msra.mxu0 0.0
        %665 = vmatprep.mubr.f32.mxu0 0.0
        %666 = vmatmul.mubr.f32.gmra.mxu0 %v599
        %v667 = vpop.f32.mrf.mxu0
        %v668 = vadd.f32 0.0, %v667
        %v669 = vpop.f32.mrf.mxu0
        %670 = vdwg.mxu0
        %v672 = vsel %vm522, %v597, 0
        %674 = vmatprep.subr.mxu0 0.0
        %675 = vmatpush1.msra.mxu0 0.0
        %676 = vmatprep.subr.mxu0 0.0
        %677 = vmatpush1.msra.mxu0 0.0
        %678 = vmatprep.subr.mxu0 0.0
        %679 = vmatpush1.msra.mxu0 0.0
        %680 = vmatprep.subr.mxu0 0.0
        %681 = vmatpush1.msra.mxu0 0.0
        %682 = vmatprep.subr.mxu0 0.0
        %683 = vmatpush1.msra.mxu0 0.0
        %684 = vmatprep.subr.mxu0 0.0
        %685 = vmatpush1.msra.mxu0 0.0
        %686 = vmatprep.subr.mxu0 0.0
        %687 = vmatpush1.msra.mxu0 0.0
        %688 = vmatprep.subr.mxu0 0.0
        %689 = vmatpush1.msra.mxu0 0.0
        %690 = vmatprep.subr.mxu0 0.0
        %691 = vmatpush1.msra.mxu0 0.0
        %692 = vmatprep.subr.mxu0 0.0
        %693 = vmatpush1.msra.mxu0 0.0
        %694 = vmatprep.subr.mxu0 0.0
        %695 = vmatpush1.msra.mxu0 0.0
        %696 = vmatprep.subr.mxu0 0.0
        %697 = vmatpush1.msra.mxu0 0.0
        %698 = vmatprep.subr.mxu0 0.0
        %699 = vmatpush1.msra.mxu0 %v426
        %700 = vmatprep.subr.mxu0 0.0
        %701 = vmatpush1.msra.mxu0 %v425
        %702 = vmatprep.subr.mxu0 0.0
        %703 = vmatpush1.msra.mxu0 %v424
        %704 = vmatprep.subr.mxu0 0.0
        %705 = vmatpush1.msra.mxu0 %v423
        %706 = vmatprep.subr.mxu0 0.0
        %707 = vmatpush2.msra.mxu0 0.0
        %708 = vmatprep.subr.mxu0 0.0
        %709 = vmatpush2.msra.mxu0 0.0
        %710 = vmatprep.subr.mxu0 0.0
        %711 = vmatpush2.msra.mxu0 0.0
        %712 = vmatprep.subr.mxu0 0.0
        %713 = vmatpush2.msra.mxu0 0.0
        %714 = vmatprep.subr.mxu0 0.0
        %715 = vmatpush2.msra.mxu0 0.0
        %716 = vmatprep.subr.mxu0 0.0
        %717 = vmatpush2.msra.mxu0 0.0
        %718 = vmatprep.subr.mxu0 0.0
        %719 = vmatpush2.msra.mxu0 0.0
        %720 = vmatprep.subr.mxu0 0.0
        %721 = vmatpush2.msra.mxu0 0.0
        %722 = vmatprep.subr.mxu0 0.0
        %723 = vmatpush2.msra.mxu0 0.0
        %724 = vmatprep.subr.mxu0 0.0
        %725 = vmatpush2.msra.mxu0 0.0
        %726 = vmatprep.subr.mxu0 0.0
        %727 = vmatpush2.msra.mxu0 0.0
        %728 = vmatprep.subr.mxu0 0.0
        %729 = vmatpush2.msra.mxu0 0.0
        %730 = vmatprep.subr.mxu0 0.0
        %731 = vmatpush2.msra.mxu0 0.0
        %732 = vmatprep.subr.mxu0 0.0
        %733 = vmatpush2.msra.mxu0 0.0
        %734 = vmatprep.subr.mxu0 0.0
        %735 = vmatpush2.msra.mxu0 0.0
        %736 = vmatprep.subr.mxu0 0.0
        %737 = vmatpush2.msra.mxu0 0.0
        %738 = vmatprep.mubr.f32.mxu0 0.0
        %739 = vmatmul.mubr.f32.gmra.mxu0 %v672
        %v740 = vpop.f32.mrf.mxu0
        %v741 = vadd.f32 %v668, %v740
        %v742 = vpop.f32.mrf.mxu0
        %743 = vdwg.mxu0
        %v744 = vadd.f32 %v741, %v443
        %v745 = vtanh.pop %v744
        %s746 = scalar_lea.vmem %s360, 2 [#allocation4]
        %v747 = vld [vmem:[%s746] sm:$0x3]
        %v749 = vsel %vm448, %v747, 0
        %751 = vmatprep.subr.mxu0 0.0
        %752 = vmatpush1.msra.mxu0 0.0
        %753 = vmatprep.subr.mxu0 0.0
        %754 = vmatpush1.msra.mxu0 0.0
        %755 = vmatprep.subr.mxu0 0.0
        %756 = vmatpush1.msra.mxu0 0.0
        %757 = vmatprep.subr.mxu0 0.0
        %758 = vmatpush1.msra.mxu0 0.0
        %759 = vmatprep.subr.mxu0 0.0
        %760 = vmatpush1.msra.mxu0 0.0
        %761 = vmatprep.subr.mxu0 0.0
        %762 = vmatpush1.msra.mxu0 0.0
        %763 = vmatprep.subr.mxu0 0.0
        %764 = vmatpush1.msra.mxu0 0.0
        %765 = vmatprep.subr.mxu0 0.0
        %766 = vmatpush1.msra.mxu0 0.0
        %767 = vmatprep.subr.mxu0 0.0
        %768 = vmatpush1.msra.mxu0 0.0
        %769 = vmatprep.subr.mxu0 0.0
        %770 = vmatpush1.msra.mxu0 0.0
        %771 = vmatprep.subr.mxu0 0.0
        %772 = vmatpush1.msra.mxu0 0.0
        %773 = vmatprep.subr.mxu0 0.0
        %774 = vmatpush1.msra.mxu0 0.0
        %775 = vmatprep.subr.mxu0 0.0
        %776 = vmatpush1.msra.mxu0 0.0
        %777 = vmatprep.subr.mxu0 0.0
        %778 = vmatpush1.msra.mxu0 0.0
        %779 = vmatprep.subr.mxu0 0.0
        %780 = vmatpush1.msra.mxu0 0.0
        %781 = vmatprep.subr.mxu0 0.0
        %782 = vmatpush1.msra.mxu0 %v418
        %783 = vmatprep.subr.mxu0 0.0
        %784 = vmatpush2.msra.mxu0 0.0
        %785 = vmatprep.subr.mxu0 0.0
        %786 = vmatpush2.msra.mxu0 0.0
        %787 = vmatprep.subr.mxu0 0.0
        %788 = vmatpush2.msra.mxu0 0.0
        %789 = vmatprep.subr.mxu0 0.0
        %790 = vmatpush2.msra.mxu0 0.0
        %791 = vmatprep.subr.mxu0 0.0
        %792 = vmatpush2.msra.mxu0 0.0
        %793 = vmatprep.subr.mxu0 0.0
        %794 = vmatpush2.msra.mxu0 0.0
        %795 = vmatprep.subr.mxu0 0.0
        %796 = vmatpush2.msra.mxu0 0.0
        %797 = vmatprep.subr.mxu0 0.0
        %798 = vmatpush2.msra.mxu0 0.0
        %799 = vmatprep.subr.mxu0 0.0
        %800 = vmatpush2.msra.mxu0 0.0
        %801 = vmatprep.subr.mxu0 0.0
        %802 = vmatpush2.msra.mxu0 0.0
        %803 = vmatprep.subr.mxu0 0.0
        %804 = vmatpush2.msra.mxu0 0.0
        %805 = vmatprep.subr.mxu0 0.0
        %806 = vmatpush2.msra.mxu0 0.0
        %807 = vmatprep.subr.mxu0 0.0
        %808 = vmatpush2.msra.mxu0 0.0
        %809 = vmatprep.subr.mxu0 0.0
        %810 = vmatpush2.msra.mxu0 0.0
        %811 = vmatprep.subr.mxu0 0.0
        %812 = vmatpush2.msra.mxu0 0.0
        %813 = vmatprep.subr.mxu0 0.0
        %814 = vmatpush2.msra.mxu0 0.0
        %815 = vmatprep.mubr.f32.mxu0 0.0
        %816 = vmatmul.mubr.f32.gmra.mxu0 %v749
        %v817 = vpop.f32.mrf.mxu0
        %v818 = vadd.f32 %v436, %v817
        %v819 = vpop.f32.mrf.mxu0
        %820 = vdwg.mxu0
        %821 = vmatprep.subr.mxu0 0.0
        %822 = vmatpush1.msra.mxu0 0.0
        %823 = vmatprep.subr.mxu0 0.0
        %824 = vmatpush1.msra.mxu0 0.0
        %825 = vmatprep.subr.mxu0 0.0
        %826 = vmatpush1.msra.mxu0 0.0
        %827 = vmatprep.subr.mxu0 0.0
        %828 = vmatpush1.msra.mxu0 0.0
        %829 = vmatprep.subr.mxu0 0.0
        %830 = vmatpush1.msra.mxu0 0.0
        %831 = vmatprep.subr.mxu0 0.0
        %832 = vmatpush1.msra.mxu0 0.0
        %833 = vmatprep.subr.mxu0 0.0
        %834 = vmatpush1.msra.mxu0 0.0
        %835 = vmatprep.subr.mxu0 0.0
        %836 = vmatpush1.msra.mxu0 0.0
        %837 = vmatprep.subr.mxu0 0.0
        %838 = vmatpush1.msra.mxu0 0.0
        %839 = vmatprep.subr.mxu0 0.0
        %840 = vmatpush1.msra.mxu0 0.0
        %841 = vmatprep.subr.mxu0 0.0
        %842 = vmatpush1.msra.mxu0 0.0
        %843 = vmatprep.subr.mxu0 0.0
        %844 = vmatpush1.msra.mxu0 0.0
        %845 = vmatprep.subr.mxu0 0.0
        %846 = vmatpush1.msra.mxu0 %v422
        %847 = vmatprep.subr.mxu0 0.0
        %848 = vmatpush1.msra.mxu0 %v421
        %849 = vmatprep.subr.mxu0 0.0
        %850 = vmatpush1.msra.mxu0 %v420
        %851 = vmatprep.subr.mxu0 0.0
        %852 = vmatpush1.msra.mxu0 %v419
        %853 = vmatprep.subr.mxu0 0.0
        %854 = vmatpush2.msra.mxu0 0.0
        %855 = vmatprep.subr.mxu0 0.0
        %856 = vmatpush2.msra.mxu0 0.0
        %857 = vmatprep.subr.mxu0 0.0
        %858 = vmatpush2.msra.mxu0 0.0
        %859 = vmatprep.subr.mxu0 0.0
        %860 = vmatpush2.msra.mxu0 0.0
        %861 = vmatprep.subr.mxu0 0.0
        %862 = vmatpush2.msra.mxu0 0.0
        %863 = vmatprep.subr.mxu0 0.0
        %864 = vmatpush2.msra.mxu0 0.0
        %865 = vmatprep.subr.mxu0 0.0
        %866 = vmatpush2.msra.mxu0 0.0
        %867 = vmatprep.subr.mxu0 0.0
        %868 = vmatpush2.msra.mxu0 0.0
        %869 = vmatprep.subr.mxu0 0.0
        %870 = vmatpush2.msra.mxu0 0.0
        %871 = vmatprep.subr.mxu0 0.0
        %872 = vmatpush2.msra.mxu0 0.0
        %873 = vmatprep.subr.mxu0 0.0
        %874 = vmatpush2.msra.mxu0 0.0
        %875 = vmatprep.subr.mxu0 0.0
        %876 = vmatpush2.msra.mxu0 0.0
        %877 = vmatprep.subr.mxu0 0.0
        %878 = vmatpush2.msra.mxu0 0.0
        %879 = vmatprep.subr.mxu0 0.0
        %880 = vmatpush2.msra.mxu0 0.0
        %881 = vmatprep.subr.mxu0 0.0
        %882 = vmatpush2.msra.mxu0 0.0
        %883 = vmatprep.subr.mxu0 0.0
        %884 = vmatpush2.msra.mxu0 0.0
        %885 = vmatprep.mubr.f32.mxu0 0.0
        %886 = vmatmul.mubr.f32.gmra.mxu0 %v672
        %v887 = vpop.f32.mrf.mxu0
        %v888 = vadd.f32 0.0, %v887
        %v889 = vpop.f32.mrf.mxu0
        %890 = vdwg.mxu0
        %v891 = vadd.f32 %v818, %v888
        %v892 = vtanh.pop %v891
        %v894 = vsel %vm522, %v745, 0
        %896 = vmatprep.subr.mxu0 0.0
        %897 = vmatpush1.msra.mxu0 0.0
        %898 = vmatprep.subr.mxu0 0.0
        %899 = vmatpush1.msra.mxu0 0.0
        %900 = vmatprep.subr.mxu0 0.0
        %901 = vmatpush1.msra.mxu0 0.0
        %902 = vmatprep.subr.mxu0 0.0
        %903 = vmatpush1.msra.mxu0 0.0
        %904 = vmatprep.subr.mxu0 0.0
        %905 = vmatpush1.msra.mxu0 0.0
        %906 = vmatprep.subr.mxu0 0.0
        %907 = vmatpush1.msra.mxu0 0.0
        %908 = vmatprep.subr.mxu0 0.0
        %909 = vmatpush1.msra.mxu0 0.0
        %910 = vmatprep.subr.mxu0 0.0
        %911 = vmatpush1.msra.mxu0 0.0
        %912 = vmatprep.subr.mxu0 0.0
        %913 = vmatpush1.msra.mxu0 0.0
        %914 = vmatprep.subr.mxu0 0.0
        %915 = vmatpush1.msra.mxu0 0.0
        %916 = vmatprep.subr.mxu0 0.0
        %917 = vmatpush1.msra.mxu0 0.0
        %918 = vmatprep.subr.mxu0 0.0
        %919 = vmatpush1.msra.mxu0 0.0
        %920 = vmatprep.subr.mxu0 0.0
        %921 = vmatpush1.msra.mxu0 %v430
        %922 = vmatprep.subr.mxu0 0.0
        %923 = vmatpush1.msra.mxu0 %v429
        %924 = vmatprep.subr.mxu0 0.0
        %925 = vmatpush1.msra.mxu0 %v428
        %926 = vmatprep.subr.mxu0 0.0
        %927 = vmatpush1.msra.mxu0 %v427
        %928 = vmatprep.subr.mxu0 0.0
        %929 = vmatpush2.msra.mxu0 0.0
        %930 = vmatprep.subr.mxu0 0.0
        %931 = vmatpush2.msra.mxu0 0.0
        %932 = vmatprep.subr.mxu0 0.0
        %933 = vmatpush2.msra.mxu0 0.0
        %934 = vmatprep.subr.mxu0 0.0
        %935 = vmatpush2.msra.mxu0 0.0
        %936 = vmatprep.subr.mxu0 0.0
        %937 = vmatpush2.msra.mxu0 0.0
        %938 = vmatprep.subr.mxu0 0.0
        %939 = vmatpush2.msra.mxu0 0.0
        %940 = vmatprep.subr.mxu0 0.0
        %941 = vmatpush2.msra.mxu0 0.0
        %942 = vmatprep.subr.mxu0 0.0
        %943 = vmatpush2.msra.mxu0 0.0
        %944 = vmatprep.subr.mxu0 0.0
        %945 = vmatpush2.msra.mxu0 0.0
        %946 = vmatprep.subr.mxu0 0.0
        %947 = vmatpush2.msra.mxu0 0.0
        %948 = vmatprep.subr.mxu0 0.0
        %949 = vmatpush2.msra.mxu0 0.0
        %950 = vmatprep.subr.mxu0 0.0
        %951 = vmatpush2.msra.mxu0 0.0
        %952 = vmatprep.subr.mxu0 0.0
        %953 = vmatpush2.msra.mxu0 0.0
        %954 = vmatprep.subr.mxu0 0.0
        %955 = vmatpush2.msra.mxu0 0.0
        %956 = vmatprep.subr.mxu0 0.0
        %957 = vmatpush2.msra.mxu0 0.0
        %958 = vmatprep.subr.mxu0 0.0
        %959 = vmatpush2.msra.mxu0 0.0
        %960 = vmatprep.mubr.f32.mxu0 0.0
        %961 = vmatmul.mubr.f32.gmra.mxu0 %v894
        %v962 = vpop.f32.mrf.mxu0
        %v963 = vadd.f32 0.0, %v962
        %v964 = vpop.f32.mrf.mxu0
        %965 = vdwg.mxu0
        %v967 = vsel %vm522, %v892, 0
        %969 = vmatprep.subr.mxu0 0.0
        %970 = vmatpush1.msra.mxu0 0.0
        %971 = vmatprep.subr.mxu0 0.0
        %972 = vmatpush1.msra.mxu0 0.0
        %973 = vmatprep.subr.mxu0 0.0
        %974 = vmatpush1.msra.mxu0 0.0
        %975 = vmatprep.subr.mxu0 0.0
        %976 = vmatpush1.msra.mxu0 0.0
        %977 = vmatprep.subr.mxu0 0.0
        %978 = vmatpush1.msra.mxu0 0.0
        %979 = vmatprep.subr.mxu0 0.0
        %980 = vmatpush1.msra.mxu0 0.0
        %981 = vmatprep.subr.mxu0 0.0
        %982 = vmatpush1.msra.mxu0 0.0
        %983 = vmatprep.subr.mxu0 0.0
        %984 = vmatpush1.msra.mxu0 0.0
        %985 = vmatprep.subr.mxu0 0.0
        %986 = vmatpush1.msra.mxu0 0.0
        %987 = vmatprep.subr.mxu0 0.0
        %988 = vmatpush1.msra.mxu0 0.0
        %989 = vmatprep.subr.mxu0 0.0
        %990 = vmatpush1.msra.mxu0 0.0
        %991 = vmatprep.subr.mxu0 0.0
        %992 = vmatpush1.msra.mxu0 0.0
        %993 = vmatprep.subr.mxu0 0.0
        %994 = vmatpush1.msra.mxu0 %v426
        %995 = vmatprep.subr.mxu0 0.0
        %996 = vmatpush1.msra.mxu0 %v425
        %997 = vmatprep.subr.mxu0 0.0
        %998 = vmatpush1.msra.mxu0 %v424
        %999 = vmatprep.subr.mxu0 0.0
        %1000 = vmatpush1.msra.mxu0 %v423
        %1001 = vmatprep.subr.mxu0 0.0
        %1002 = vmatpush2.msra.mxu0 0.0
        %1003 = vmatprep.subr.mxu0 0.0
        %1004 = vmatpush2.msra.mxu0 0.0
        %1005 = vmatprep.subr.mxu0 0.0
        %1006 = vmatpush2.msra.mxu0 0.0
        %1007 = vmatprep.subr.mxu0 0.0
        %1008 = vmatpush2.msra.mxu0 0.0
        %1009 = vmatprep.subr.mxu0 0.0
        %1010 = vmatpush2.msra.mxu0 0.0
        %1011 = vmatprep.subr.mxu0 0.0
        %1012 = vmatpush2.msra.mxu0 0.0
        %1013 = vmatprep.subr.mxu0 0.0
        %1014 = vmatpush2.msra.mxu0 0.0
        %1015 = vmatprep.subr.mxu0 0.0
        %1016 = vmatpush2.msra.mxu0 0.0
        %1017 = vmatprep.subr.mxu0 0.0
        %1018 = vmatpush2.msra.mxu0 0.0
        %1019 = vmatprep.subr.mxu0 0.0
        %1020 = vmatpush2.msra.mxu0 0.0
        %1021 = vmatprep.subr.mxu0 0.0
        %1022 = vmatpush2.msra.mxu0 0.0
        %1023 = vmatprep.subr.mxu0 0.0
        %1024 = vmatpush2.msra.mxu0 0.0
        %1025 = vmatprep.subr.mxu0 0.0
        %1026 = vmatpush2.msra.mxu0 0.0
        %1027 = vmatprep.subr.mxu0 0.0
        %1028 = vmatpush2.msra.mxu0 0.0
        %1029 = vmatprep.subr.mxu0 0.0
        %1030 = vmatpush2.msra.mxu0 0.0
        %1031 = vmatprep.subr.mxu0 0.0
        %1032 = vmatpush2.msra.mxu0 0.0
        %1033 = vmatprep.mubr.f32.mxu0 0.0
        %1034 = vmatmul.mubr.f32.gmra.mxu0 %v967
        %v1035 = vpop.f32.mrf.mxu0
        %v1036 = vadd.f32 %v963, %v1035
        %v1037 = vpop.f32.mrf.mxu0
        %1038 = vdwg.mxu0
        %v1039 = vadd.f32 %v1036, %v443
        %v1040 = vtanh.pop %v1039
        %s1041 = scalar_lea.vmem %s360, 4 [#allocation4]
        %v1042 = vld [vmem:[%s1041] sm:$0x3]
        %v1044 = vsel %vm448, %v1042, 0
        %1046 = vmatprep.subr.mxu0 0.0
        %1047 = vmatpush1.msra.mxu0 0.0
        %1048 = vmatprep.subr.mxu0 0.0
        %1049 = vmatpush1.msra.mxu0 0.0
        %1050 = vmatprep.subr.mxu0 0.0
        %1051 = vmatpush1.msra.mxu0 0.0
        %1052 = vmatprep.subr.mxu0 0.0
        %1053 = vmatpush1.msra.mxu0 0.0
        %1054 = vmatprep.subr.mxu0 0.0
        %1055 = vmatpush1.msra.mxu0 0.0
        %1056 = vmatprep.subr.mxu0 0.0
        %1057 = vmatpush1.msra.mxu0 0.0
        %1058 = vmatprep.subr.mxu0 0.0
        %1059 = vmatpush1.msra.mxu0 0.0
        %1060 = vmatprep.subr.mxu0 0.0
        %1061 = vmatpush1.msra.mxu0 0.0
        %1062 = vmatprep.subr.mxu0 0.0
        %1063 = vmatpush1.msra.mxu0 0.0
        %1064 = vmatprep.subr.mxu0 0.0
        %1065 = vmatpush1.msra.mxu0 0.0
        %1066 = vmatprep.subr.mxu0 0.0
        %1067 = vmatpush1.msra.mxu0 0.0
        %1068 = vmatprep.subr.mxu0 0.0
        %1069 = vmatpush1.msra.mxu0 0.0
        %1070 = vmatprep.subr.mxu0 0.0
        %1071 = vmatpush1.msra.mxu0 0.0
        %1072 = vmatprep.subr.mxu0 0.0
        %1073 = vmatpush1.msra.mxu0 0.0
        %1074 = vmatprep.subr.mxu0 0.0
        %1075 = vmatpush1.msra.mxu0 0.0
        %1076 = vmatprep.subr.mxu0 0.0
        %1077 = vmatpush1.msra.mxu0 %v418
        %1078 = vmatprep.subr.mxu0 0.0
        %1079 = vmatpush2.msra.mxu0 0.0
        %1080 = vmatprep.subr.mxu0 0.0
        %1081 = vmatpush2.msra.mxu0 0.0
        %1082 = vmatprep.subr.mxu0 0.0
        %1083 = vmatpush2.msra.mxu0 0.0
        %1084 = vmatprep.subr.mxu0 0.0
        %1085 = vmatpush2.msra.mxu0 0.0
        %1086 = vmatprep.subr.mxu0 0.0
        %1087 = vmatpush2.msra.mxu0 0.0
        %1088 = vmatprep.subr.mxu0 0.0
        %1089 = vmatpush2.msra.mxu0 0.0
        %1090 = vmatprep.subr.mxu0 0.0
        %1091 = vmatpush2.msra.mxu0 0.0
        %1092 = vmatprep.subr.mxu0 0.0
        %1093 = vmatpush2.msra.mxu0 0.0
        %1094 = vmatprep.subr.mxu0 0.0
        %1095 = vmatpush2.msra.mxu0 0.0
        %1096 = vmatprep.subr.mxu0 0.0
        %1097 = vmatpush2.msra.mxu0 0.0
        %1098 = vmatprep.subr.mxu0 0.0
        %1099 = vmatpush2.msra.mxu0 0.0
        %1100 = vmatprep.subr.mxu0 0.0
        %1101 = vmatpush2.msra.mxu0 0.0
        %1102 = vmatprep.subr.mxu0 0.0
        %1103 = vmatpush2.msra.mxu0 0.0
        %1104 = vmatprep.subr.mxu0 0.0
        %1105 = vmatpush2.msra.mxu0 0.0
        %1106 = vmatprep.subr.mxu0 0.0
        %1107 = vmatpush2.msra.mxu0 0.0
        %1108 = vmatprep.subr.mxu0 0.0
        %1109 = vmatpush2.msra.mxu0 0.0
        %1110 = vmatprep.mubr.f32.mxu0 0.0
        %1111 = vmatmul.mubr.f32.gmra.mxu0 %v1044
        %v1112 = vpop.f32.mrf.mxu0
        %v1113 = vadd.f32 %v436, %v1112
        %v1114 = vpop.f32.mrf.mxu0
        %1115 = vdwg.mxu0
        %1116 = vmatprep.subr.mxu0 0.0
        %1117 = vmatpush1.msra.mxu0 0.0
        %1118 = vmatprep.subr.mxu0 0.0
        %1119 = vmatpush1.msra.mxu0 0.0
        %1120 = vmatprep.subr.mxu0 0.0
        %1121 = vmatpush1.msra.mxu0 0.0
        %1122 = vmatprep.subr.mxu0 0.0
        %1123 = vmatpush1.msra.mxu0 0.0
        %1124 = vmatprep.subr.mxu0 0.0
        %1125 = vmatpush1.msra.mxu0 0.0
        %1126 = vmatprep.subr.mxu0 0.0
        %1127 = vmatpush1.msra.mxu0 0.0
        %1128 = vmatprep.subr.mxu0 0.0
        %1129 = vmatpush1.msra.mxu0 0.0
        %1130 = vmatprep.subr.mxu0 0.0
        %1131 = vmatpush1.msra.mxu0 0.0
        %1132 = vmatprep.subr.mxu0 0.0
        %1133 = vmatpush1.msra.mxu0 0.0
        %1134 = vmatprep.subr.mxu0 0.0
        %1135 = vmatpush1.msra.mxu0 0.0
        %1136 = vmatprep.subr.mxu0 0.0
        %1137 = vmatpush1.msra.mxu0 0.0
        %1138 = vmatprep.subr.mxu0 0.0
        %1139 = vmatpush1.msra.mxu0 0.0
        %1140 = vmatprep.subr.mxu0 0.0
        %1141 = vmatpush1.msra.mxu0 %v422
        %1142 = vmatprep.subr.mxu0 0.0
        %1143 = vmatpush1.msra.mxu0 %v421
        %1144 = vmatprep.subr.mxu0 0.0
        %1145 = vmatpush1.msra.mxu0 %v420
        %1146 = vmatprep.subr.mxu0 0.0
        %1147 = vmatpush1.msra.mxu0 %v419
        %1148 = vmatprep.subr.mxu0 0.0
        %1149 = vmatpush2.msra.mxu0 0.0
        %1150 = vmatprep.subr.mxu0 0.0
        %1151 = vmatpush2.msra.mxu0 0.0
        %1152 = vmatprep.subr.mxu0 0.0
        %1153 = vmatpush2.msra.mxu0 0.0
        %1154 = vmatprep.subr.mxu0 0.0
        %1155 = vmatpush2.msra.mxu0 0.0
        %1156 = vmatprep.subr.mxu0 0.0
        %1157 = vmatpush2.msra.mxu0 0.0
        %1158 = vmatprep.subr.mxu0 0.0
        %1159 = vmatpush2.msra.mxu0 0.0
        %1160 = vmatprep.subr.mxu0 0.0
        %1161 = vmatpush2.msra.mxu0 0.0
        %1162 = vmatprep.subr.mxu0 0.0
        %1163 = vmatpush2.msra.mxu0 0.0
        %1164 = vmatprep.subr.mxu0 0.0
        %1165 = vmatpush2.msra.mxu0 0.0
        %1166 = vmatprep.subr.mxu0 0.0
        %1167 = vmatpush2.msra.mxu0 0.0
        %1168 = vmatprep.subr.mxu0 0.0
        %1169 = vmatpush2.msra.mxu0 0.0
        %1170 = vmatprep.subr.mxu0 0.0
        %1171 = vmatpush2.msra.mxu0 0.0
        %1172 = vmatprep.subr.mxu0 0.0
        %1173 = vmatpush2.msra.mxu0 0.0
        %1174 = vmatprep.subr.mxu0 0.0
        %1175 = vmatpush2.msra.mxu0 0.0
        %1176 = vmatprep.subr.mxu0 0.0
        %1177 = vmatpush2.msra.mxu0 0.0
        %1178 = vmatprep.subr.mxu0 0.0
        %1179 = vmatpush2.msra.mxu0 0.0
        %1180 = vmatprep.mubr.f32.mxu0 0.0
        %1181 = vmatmul.mubr.f32.gmra.mxu0 %v967
        %v1182 = vpop.f32.mrf.mxu0
        %v1183 = vadd.f32 0.0, %v1182
        %v1184 = vpop.f32.mrf.mxu0
        %1185 = vdwg.mxu0
        %v1186 = vadd.f32 %v1113, %v1183
        %v1187 = vtanh.pop %v1186
        %v1189 = vsel %vm522, %v1040, 0
        %1191 = vmatprep.subr.mxu0 0.0
        %1192 = vmatpush1.msra.mxu0 0.0
        %1193 = vmatprep.subr.mxu0 0.0
        %1194 = vmatpush1.msra.mxu0 0.0
        %1195 = vmatprep.subr.mxu0 0.0
        %1196 = vmatpush1.msra.mxu0 0.0
        %1197 = vmatprep.subr.mxu0 0.0
        %1198 = vmatpush1.msra.mxu0 0.0
        %1199 = vmatprep.subr.mxu0 0.0
        %1200 = vmatpush1.msra.mxu0 0.0
        %1201 = vmatprep.subr.mxu0 0.0
        %1202 = vmatpush1.msra.mxu0 0.0
        %1203 = vmatprep.subr.mxu0 0.0
        %1204 = vmatpush1.msra.mxu0 0.0
        %1205 = vmatprep.subr.mxu0 0.0
        %1206 = vmatpush1.msra.mxu0 0.0
        %1207 = vmatprep.subr.mxu0 0.0
        %1208 = vmatpush1.msra.mxu0 0.0
        %1209 = vmatprep.subr.mxu0 0.0
        %1210 = vmatpush1.msra.mxu0 0.0
        %1211 = vmatprep.subr.mxu0 0.0
        %1212 = vmatpush1.msra.mxu0 0.0
        %1213 = vmatprep.subr.mxu0 0.0
        %1214 = vmatpush1.msra.mxu0 0.0
        %1215 = vmatprep.subr.mxu0 0.0
        %1216 = vmatpush1.msra.mxu0 %v430
        %1217 = vmatprep.subr.mxu0 0.0
        %1218 = vmatpush1.msra.mxu0 %v429
        %1219 = vmatprep.subr.mxu0 0.0
        %1220 = vmatpush1.msra.mxu0 %v428
        %1221 = vmatprep.subr.mxu0 0.0
        %1222 = vmatpush1.msra.mxu0 %v427
        %1223 = vmatprep.subr.mxu0 0.0
        %1224 = vmatpush2.msra.mxu0 0.0
        %1225 = vmatprep.subr.mxu0 0.0
        %1226 = vmatpush2.msra.mxu0 0.0
        %1227 = vmatprep.subr.mxu0 0.0
        %1228 = vmatpush2.msra.mxu0 0.0
        %1229 = vmatprep.subr.mxu0 0.0
        %1230 = vmatpush2.msra.mxu0 0.0
        %1231 = vmatprep.subr.mxu0 0.0
        %1232 = vmatpush2.msra.mxu0 0.0
        %1233 = vmatprep.subr.mxu0 0.0
        %1234 = vmatpush2.msra.mxu0 0.0
        %1235 = vmatprep.subr.mxu0 0.0
        %1236 = vmatpush2.msra.mxu0 0.0
        %1237 = vmatprep.subr.mxu0 0.0
        %1238 = vmatpush2.msra.mxu0 0.0
        %1239 = vmatprep.subr.mxu0 0.0
        %1240 = vmatpush2.msra.mxu0 0.0
        %1241 = vmatprep.subr.mxu0 0.0
        %1242 = vmatpush2.msra.mxu0 0.0
        %1243 = vmatprep.subr.mxu0 0.0
        %1244 = vmatpush2.msra.mxu0 0.0
        %1245 = vmatprep.subr.mxu0 0.0
        %1246 = vmatpush2.msra.mxu0 0.0
        %1247 = vmatprep.subr.mxu0 0.0
        %1248 = vmatpush2.msra.mxu0 0.0
        %1249 = vmatprep.subr.mxu0 0.0
        %1250 = vmatpush2.msra.mxu0 0.0
        %1251 = vmatprep.subr.mxu0 0.0
        %1252 = vmatpush2.msra.mxu0 0.0
        %1253 = vmatprep.subr.mxu0 0.0
        %1254 = vmatpush2.msra.mxu0 0.0
        %1255 = vmatprep.mubr.f32.mxu0 0.0
        %1256 = vmatmul.mubr.f32.gmra.mxu0 %v1189
        %v1257 = vpop.f32.mrf.mxu0
        %v1258 = vadd.f32 0.0, %v1257
        %v1259 = vpop.f32.mrf.mxu0
        %1260 = vdwg.mxu0
        %v1262 = vsel %vm522, %v1187, 0
        %1264 = vmatprep.subr.mxu0 0.0
        %1265 = vmatpush1.msra.mxu0 0.0
        %1266 = vmatprep.subr.mxu0 0.0
        %1267 = vmatpush1.msra.mxu0 0.0
        %1268 = vmatprep.subr.mxu0 0.0
        %1269 = vmatpush1.msra.mxu0 0.0
        %1270 = vmatprep.subr.mxu0 0.0
        %1271 = vmatpush1.msra.mxu0 0.0
        %1272 = vmatprep.subr.mxu0 0.0
        %1273 = vmatpush1.msra.mxu0 0.0
        %1274 = vmatprep.subr.mxu0 0.0
        %1275 = vmatpush1.msra.mxu0 0.0
        %1276 = vmatprep.subr.mxu0 0.0
        %1277 = vmatpush1.msra.mxu0 0.0
        %1278 = vmatprep.subr.mxu0 0.0
        %1279 = vmatpush1.msra.mxu0 0.0
        %1280 = vmatprep.subr.mxu0 0.0
        %1281 = vmatpush1.msra.mxu0 0.0
        %1282 = vmatprep.subr.mxu0 0.0
        %1283 = vmatpush1.msra.mxu0 0.0
        %1284 = vmatprep.subr.mxu0 0.0
        %1285 = vmatpush1.msra.mxu0 0.0
        %1286 = vmatprep.subr.mxu0 0.0
        %1287 = vmatpush1.msra.mxu0 0.0
        %1288 = vmatprep.subr.mxu0 0.0
        %1289 = vmatpush1.msra.mxu0 %v426
        %1290 = vmatprep.subr.mxu0 0.0
        %1291 = vmatpush1.msra.mxu0 %v425
        %1292 = vmatprep.subr.mxu0 0.0
        %1293 = vmatpush1.msra.mxu0 %v424
        %1294 = vmatprep.subr.mxu0 0.0
        %1295 = vmatpush1.msra.mxu0 %v423
        %1296 = vmatprep.subr.mxu0 0.0
        %1297 = vmatpush2.msra.mxu0 0.0
        %1298 = vmatprep.subr.mxu0 0.0
        %1299 = vmatpush2.msra.mxu0 0.0
        %1300 = vmatprep.subr.mxu0 0.0
        %1301 = vmatpush2.msra.mxu0 0.0
        %1302 = vmatprep.subr.mxu0 0.0
        %1303 = vmatpush2.msra.mxu0 0.0
        %1304 = vmatprep.subr.mxu0 0.0
        %1305 = vmatpush2.msra.mxu0 0.0
        %1306 = vmatprep.subr.mxu0 0.0
        %1307 = vmatpush2.msra.mxu0 0.0
        %1308 = vmatprep.subr.mxu0 0.0
        %1309 = vmatpush2.msra.mxu0 0.0
        %1310 = vmatprep.subr.mxu0 0.0
        %1311 = vmatpush2.msra.mxu0 0.0
        %1312 = vmatprep.subr.mxu0 0.0
        %1313 = vmatpush2.msra.mxu0 0.0
        %1314 = vmatprep.subr.mxu0 0.0
        %1315 = vmatpush2.msra.mxu0 0.0
        %1316 = vmatprep.subr.mxu0 0.0
        %1317 = vmatpush2.msra.mxu0 0.0
        %1318 = vmatprep.subr.mxu0 0.0
        %1319 = vmatpush2.msra.mxu0 0.0
        %1320 = vmatprep.subr.mxu0 0.0
        %1321 = vmatpush2.msra.mxu0 0.0
        %1322 = vmatprep.subr.mxu0 0.0
        %1323 = vmatpush2.msra.mxu0 0.0
        %1324 = vmatprep.subr.mxu0 0.0
        %1325 = vmatpush2.msra.mxu0 0.0
        %1326 = vmatprep.subr.mxu0 0.0
        %1327 = vmatpush2.msra.mxu0 0.0
        %1328 = vmatprep.mubr.f32.mxu0 0.0
        %1329 = vmatmul.mubr.f32.gmra.mxu0 %v1262
        %v1330 = vpop.f32.mrf.mxu0
        %v1331 = vadd.f32 %v1258, %v1330
        %v1332 = vpop.f32.mrf.mxu0
        %1333 = vdwg.mxu0
        %v1334 = vadd.f32 %v1331, %v443
        %v1335 = vtanh.pop %v1334
        %s1336 = scalar_lea.vmem %s360, 6 [#allocation4]
        %v1337 = vld [vmem:[%s1336] sm:$0x3]
        %v1339 = vsel %vm448, %v1337, 0
        %1341 = vmatprep.subr.mxu0 0.0
        %1342 = vmatpush1.msra.mxu0 0.0
        %1343 = vmatprep.subr.mxu0 0.0
        %1344 = vmatpush1.msra.mxu0 0.0
        %1345 = vmatprep.subr.mxu0 0.0
        %1346 = vmatpush1.msra.mxu0 0.0
        %1347 = vmatprep.subr.mxu0 0.0
        %1348 = vmatpush1.msra.mxu0 0.0
        %1349 = vmatprep.subr.mxu0 0.0
        %1350 = vmatpush1.msra.mxu0 0.0
        %1351 = vmatprep.subr.mxu0 0.0
        %1352 = vmatpush1.msra.mxu0 0.0
        %1353 = vmatprep.subr.mxu0 0.0
        %1354 = vmatpush1.msra.mxu0 0.0
        %1355 = vmatprep.subr.mxu0 0.0
        %1356 = vmatpush1.msra.mxu0 0.0
        %1357 = vmatprep.subr.mxu0 0.0
        %1358 = vmatpush1.msra.mxu0 0.0
        %1359 = vmatprep.subr.mxu0 0.0
        %1360 = vmatpush1.msra.mxu0 0.0
        %1361 = vmatprep.subr.mxu0 0.0
        %1362 = vmatpush1.msra.mxu0 0.0
        %1363 = vmatprep.subr.mxu0 0.0
        %1364 = vmatpush1.msra.mxu0 0.0
        %1365 = vmatprep.subr.mxu0 0.0
        %1366 = vmatpush1.msra.mxu0 0.0
        %1367 = vmatprep.subr.mxu0 0.0
        %1368 = vmatpush1.msra.mxu0 0.0
        %1369 = vmatprep.subr.mxu0 0.0
        %1370 = vmatpush1.msra.mxu0 0.0
        %1371 = vmatprep.subr.mxu0 0.0
        %1372 = vmatpush1.msra.mxu0 %v418
        %1373 = vmatprep.subr.mxu0 0.0
        %1374 = vmatpush2.msra.mxu0 0.0
        %1375 = vmatprep.subr.mxu0 0.0
        %1376 = vmatpush2.msra.mxu0 0.0
        %1377 = vmatprep.subr.mxu0 0.0
        %1378 = vmatpush2.msra.mxu0 0.0
        %1379 = vmatprep.subr.mxu0 0.0
        %1380 = vmatpush2.msra.mxu0 0.0
        %1381 = vmatprep.subr.mxu0 0.0
        %1382 = vmatpush2.msra.mxu0 0.0
        %1383 = vmatprep.subr.mxu0 0.0
        %1384 = vmatpush2.msra.mxu0 0.0
        %1385 = vmatprep.subr.mxu0 0.0
        %1386 = vmatpush2.msra.mxu0 0.0
        %1387 = vmatprep.subr.mxu0 0.0
        %1388 = vmatpush2.msra.mxu0 0.0
        %1389 = vmatprep.subr.mxu0 0.0
        %1390 = vmatpush2.msra.mxu0 0.0
        %1391 = vmatprep.subr.mxu0 0.0
        %1392 = vmatpush2.msra.mxu0 0.0
        %1393 = vmatprep.subr.mxu0 0.0
        %1394 = vmatpush2.msra.mxu0 0.0
        %1395 = vmatprep.subr.mxu0 0.0
        %1396 = vmatpush2.msra.mxu0 0.0
        %1397 = vmatprep.subr.mxu0 0.0
        %1398 = vmatpush2.msra.mxu0 0.0
        %1399 = vmatprep.subr.mxu0 0.0
        %1400 = vmatpush2.msra.mxu0 0.0
        %1401 = vmatprep.subr.mxu0 0.0
        %1402 = vmatpush2.msra.mxu0 0.0
        %1403 = vmatprep.subr.mxu0 0.0
        %1404 = vmatpush2.msra.mxu0 0.0
        %1405 = vmatprep.mubr.f32.mxu0 0.0
        %1406 = vmatmul.mubr.f32.gmra.mxu0 %v1339
        %v1407 = vpop.f32.mrf.mxu0
        %v1408 = vadd.f32 %v436, %v1407
        %v1409 = vpop.f32.mrf.mxu0
        %1410 = vdwg.mxu0
        %1411 = vmatprep.subr.mxu0 0.0
        %1412 = vmatpush1.msra.mxu0 0.0
        %1413 = vmatprep.subr.mxu0 0.0
        %1414 = vmatpush1.msra.mxu0 0.0
        %1415 = vmatprep.subr.mxu0 0.0
        %1416 = vmatpush1.msra.mxu0 0.0
        %1417 = vmatprep.subr.mxu0 0.0
        %1418 = vmatpush1.msra.mxu0 0.0
        %1419 = vmatprep.subr.mxu0 0.0
        %1420 = vmatpush1.msra.mxu0 0.0
        %1421 = vmatprep.subr.mxu0 0.0
        %1422 = vmatpush1.msra.mxu0 0.0
        %1423 = vmatprep.subr.mxu0 0.0
        %1424 = vmatpush1.msra.mxu0 0.0
        %1425 = vmatprep.subr.mxu0 0.0
        %1426 = vmatpush1.msra.mxu0 0.0
        %1427 = vmatprep.subr.mxu0 0.0
        %1428 = vmatpush1.msra.mxu0 0.0
        %1429 = vmatprep.subr.mxu0 0.0
        %1430 = vmatpush1.msra.mxu0 0.0
        %1431 = vmatprep.subr.mxu0 0.0
        %1432 = vmatpush1.msra.mxu0 0.0
        %1433 = vmatprep.subr.mxu0 0.0
        %1434 = vmatpush1.msra.mxu0 0.0
        %1435 = vmatprep.subr.mxu0 0.0
        %1436 = vmatpush1.msra.mxu0 %v422
        %1437 = vmatprep.subr.mxu0 0.0
        %1438 = vmatpush1.msra.mxu0 %v421
        %1439 = vmatprep.subr.mxu0 0.0
        %1440 = vmatpush1.msra.mxu0 %v420
        %1441 = vmatprep.subr.mxu0 0.0
        %1442 = vmatpush1.msra.mxu0 %v419
        %1443 = vmatprep.subr.mxu0 0.0
        %1444 = vmatpush2.msra.mxu0 0.0
        %1445 = vmatprep.subr.mxu0 0.0
        %1446 = vmatpush2.msra.mxu0 0.0
        %1447 = vmatprep.subr.mxu0 0.0
        %1448 = vmatpush2.msra.mxu0 0.0
        %1449 = vmatprep.subr.mxu0 0.0
        %1450 = vmatpush2.msra.mxu0 0.0
        %1451 = vmatprep.subr.mxu0 0.0
        %1452 = vmatpush2.msra.mxu0 0.0
        %1453 = vmatprep.subr.mxu0 0.0
        %1454 = vmatpush2.msra.mxu0 0.0
        %1455 = vmatprep.subr.mxu0 0.0
        %1456 = vmatpush2.msra.mxu0 0.0
        %1457 = vmatprep.subr.mxu0 0.0
        %1458 = vmatpush2.msra.mxu0 0.0
        %1459 = vmatprep.subr.mxu0 0.0
        %1460 = vmatpush2.msra.mxu0 0.0
        %1461 = vmatprep.subr.mxu0 0.0
        %1462 = vmatpush2.msra.mxu0 0.0
        %1463 = vmatprep.subr.mxu0 0.0
        %1464 = vmatpush2.msra.mxu0 0.0
        %1465 = vmatprep.subr.mxu0 0.0
        %1466 = vmatpush2.msra.mxu0 0.0
        %1467 = vmatprep.subr.mxu0 0.0
        %1468 = vmatpush2.msra.mxu0 0.0
        %1469 = vmatprep.subr.mxu0 0.0
        %1470 = vmatpush2.msra.mxu0 0.0
        %1471 = vmatprep.subr.mxu0 0.0
        %1472 = vmatpush2.msra.mxu0 0.0
        %1473 = vmatprep.subr.mxu0 0.0
        %1474 = vmatpush2.msra.mxu0 0.0
        %1475 = vmatprep.mubr.f32.mxu0 0.0
        %1476 = vmatmul.mubr.f32.gmra.mxu0 %v1262
        %v1477 = vpop.f32.mrf.mxu0
        %v1478 = vadd.f32 0.0, %v1477
        %v1479 = vpop.f32.mrf.mxu0
        %1480 = vdwg.mxu0
        %v1481 = vadd.f32 %v1408, %v1478
        %v1482 = vtanh.pop %v1481
        %v1484 = vsel %vm522, %v1335, 0
        %1486 = vmatprep.subr.mxu0 0.0
        %1487 = vmatpush1.msra.mxu0 0.0
        %1488 = vmatprep.subr.mxu0 0.0
        %1489 = vmatpush1.msra.mxu0 0.0
        %1490 = vmatprep.subr.mxu0 0.0
        %1491 = vmatpush1.msra.mxu0 0.0
        %1492 = vmatprep.subr.mxu0 0.0
        %1493 = vmatpush1.msra.mxu0 0.0
        %1494 = vmatprep.subr.mxu0 0.0
        %1495 = vmatpush1.msra.mxu0 0.0
        %1496 = vmatprep.subr.mxu0 0.0
        %1497 = vmatpush1.msra.mxu0 0.0
        %1498 = vmatprep.subr.mxu0 0.0
        %1499 = vmatpush1.msra.mxu0 0.0
        %1500 = vmatprep.subr.mxu0 0.0
        %1501 = vmatpush1.msra.mxu0 0.0
        %1502 = vmatprep.subr.mxu0 0.0
        %1503 = vmatpush1.msra.mxu0 0.0
        %1504 = vmatprep.subr.mxu0 0.0
        %1505 = vmatpush1.msra.mxu0 0.0
        %1506 = vmatprep.subr.mxu0 0.0
        %1507 = vmatpush1.msra.mxu0 0.0
        %1508 = vmatprep.subr.mxu0 0.0
        %1509 = vmatpush1.msra.mxu0 0.0
        %1510 = vmatprep.subr.mxu0 0.0
        %1511 = vmatpush1.msra.mxu0 %v430
        %1512 = vmatprep.subr.mxu0 0.0
        %1513 = vmatpush1.msra.mxu0 %v429
        %1514 = vmatprep.subr.mxu0 0.0
        %1515 = vmatpush1.msra.mxu0 %v428
        %1516 = vmatprep.subr.mxu0 0.0
        %1517 = vmatpush1.msra.mxu0 %v427
        %1518 = vmatprep.subr.mxu0 0.0
        %1519 = vmatpush2.msra.mxu0 0.0
        %1520 = vmatprep.subr.mxu0 0.0
        %1521 = vmatpush2.msra.mxu0 0.0
        %1522 = vmatprep.subr.mxu0 0.0
        %1523 = vmatpush2.msra.mxu0 0.0
        %1524 = vmatprep.subr.mxu0 0.0
        %1525 = vmatpush2.msra.mxu0 0.0
        %1526 = vmatprep.subr.mxu0 0.0
        %1527 = vmatpush2.msra.mxu0 0.0
        %1528 = vmatprep.subr.mxu0 0.0
        %1529 = vmatpush2.msra.mxu0 0.0
        %1530 = vmatprep.subr.mxu0 0.0
        %1531 = vmatpush2.msra.mxu0 0.0
        %1532 = vmatprep.subr.mxu0 0.0
        %1533 = vmatpush2.msra.mxu0 0.0
        %1534 = vmatprep.subr.mxu0 0.0
        %1535 = vmatpush2.msra.mxu0 0.0
        %1536 = vmatprep.subr.mxu0 0.0
        %1537 = vmatpush2.msra.mxu0 0.0
        %1538 = vmatprep.subr.mxu0 0.0
        %1539 = vmatpush2.msra.mxu0 0.0
        %1540 = vmatprep.subr.mxu0 0.0
        %1541 = vmatpush2.msra.mxu0 0.0
        %1542 = vmatprep.subr.mxu0 0.0
        %1543 = vmatpush2.msra.mxu0 0.0
        %1544 = vmatprep.subr.mxu0 0.0
        %1545 = vmatpush2.msra.mxu0 0.0
        %1546 = vmatprep.subr.mxu0 0.0
        %1547 = vmatpush2.msra.mxu0 0.0
        %1548 = vmatprep.subr.mxu0 0.0
        %1549 = vmatpush2.msra.mxu0 0.0
        %1550 = vmatprep.mubr.f32.mxu0 0.0
        %1551 = vmatmul.mubr.f32.gmra.mxu0 %v1484
        %v1552 = vpop.f32.mrf.mxu0
        %v1553 = vadd.f32 0.0, %v1552
        %v1554 = vpop.f32.mrf.mxu0
        %1555 = vdwg.mxu0
        %v1557 = vsel %vm522, %v1482, 0
        %1559 = vmatprep.subr.mxu0 0.0
        %1560 = vmatpush1.msra.mxu0 0.0
        %1561 = vmatprep.subr.mxu0 0.0
        %1562 = vmatpush1.msra.mxu0 0.0
        %1563 = vmatprep.subr.mxu0 0.0
        %1564 = vmatpush1.msra.mxu0 0.0
        %1565 = vmatprep.subr.mxu0 0.0
        %1566 = vmatpush1.msra.mxu0 0.0
        %1567 = vmatprep.subr.mxu0 0.0
        %1568 = vmatpush1.msra.mxu0 0.0
        %1569 = vmatprep.subr.mxu0 0.0
        %1570 = vmatpush1.msra.mxu0 0.0
        %1571 = vmatprep.subr.mxu0 0.0
        %1572 = vmatpush1.msra.mxu0 0.0
        %1573 = vmatprep.subr.mxu0 0.0
        %1574 = vmatpush1.msra.mxu0 0.0
        %1575 = vmatprep.subr.mxu0 0.0
        %1576 = vmatpush1.msra.mxu0 0.0
        %1577 = vmatprep.subr.mxu0 0.0
        %1578 = vmatpush1.msra.mxu0 0.0
        %1579 = vmatprep.subr.mxu0 0.0
        %1580 = vmatpush1.msra.mxu0 0.0
        %1581 = vmatprep.subr.mxu0 0.0
        %1582 = vmatpush1.msra.mxu0 0.0
        %1583 = vmatprep.subr.mxu0 0.0
        %1584 = vmatpush1.msra.mxu0 %v426
        %1585 = vmatprep.subr.mxu0 0.0
        %1586 = vmatpush1.msra.mxu0 %v425
        %1587 = vmatprep.subr.mxu0 0.0
        %1588 = vmatpush1.msra.mxu0 %v424
        %1589 = vmatprep.subr.mxu0 0.0
        %1590 = vmatpush1.msra.mxu0 %v423
        %1591 = vmatprep.subr.mxu0 0.0
        %1592 = vmatpush2.msra.mxu0 0.0
        %1593 = vmatprep.subr.mxu0 0.0
        %1594 = vmatpush2.msra.mxu0 0.0
        %1595 = vmatprep.subr.mxu0 0.0
        %1596 = vmatpush2.msra.mxu0 0.0
        %1597 = vmatprep.subr.mxu0 0.0
        %1598 = vmatpush2.msra.mxu0 0.0
        %1599 = vmatprep.subr.mxu0 0.0
        %1600 = vmatpush2.msra.mxu0 0.0
        %1601 = vmatprep.subr.mxu0 0.0
        %1602 = vmatpush2.msra.mxu0 0.0
        %1603 = vmatprep.subr.mxu0 0.0
        %1604 = vmatpush2.msra.mxu0 0.0
        %1605 = vmatprep.subr.mxu0 0.0
        %1606 = vmatpush2.msra.mxu0 0.0
        %1607 = vmatprep.subr.mxu0 0.0
        %1608 = vmatpush2.msra.mxu0 0.0
        %1609 = vmatprep.subr.mxu0 0.0
        %1610 = vmatpush2.msra.mxu0 0.0
        %1611 = vmatprep.subr.mxu0 0.0
        %1612 = vmatpush2.msra.mxu0 0.0
        %1613 = vmatprep.subr.mxu0 0.0
        %1614 = vmatpush2.msra.mxu0 0.0
        %1615 = vmatprep.subr.mxu0 0.0
        %1616 = vmatpush2.msra.mxu0 0.0
        %1617 = vmatprep.subr.mxu0 0.0
        %1618 = vmatpush2.msra.mxu0 0.0
        %1619 = vmatprep.subr.mxu0 0.0
        %1620 = vmatpush2.msra.mxu0 0.0
        %1621 = vmatprep.subr.mxu0 0.0
        %1622 = vmatpush2.msra.mxu0 0.0
        %1623 = vmatprep.mubr.f32.mxu0 0.0
        %1624 = vmatmul.mubr.f32.gmra.mxu0 %v1557
        %v1625 = vpop.f32.mrf.mxu0
        %v1626 = vadd.f32 %v1553, %v1625
        %v1627 = vpop.f32.mrf.mxu0
        %1628 = vdwg.mxu0
        %v1629 = vadd.f32 %v1626, %v443
        %v1630 = vtanh.pop %v1629
        %vm1631 = vcmask 254976
        %1632 = vst.msk [vmem:[#allocation2] sm:$0x3] %vm1631, %v1482
        %1633 = vst.msk [vmem:[#allocation3] sm:$0x3] %vm1631, %v1630
        %p1634 = scmp.eq.s32.totalorder %s27, 1
        // Predicated region
        $region85: #{tpu_custom_call.1} parent=55 // pred_check
          %p1635 = pneg %p1634
        $region86: #{tpu_custom_call.1} parent=55 // pred_check_branch
          %1637 = sbr.rel (%p1635) target = $region88
        $region87: #{tpu_custom_call.1} parent=55 // pred_region
          %v1638 = vld [vmem:[#allocation13] sm:$0xff]
          %v1639 = vld [vmem:[#allocation13 + $0x8] sm:$0xff]
          %v1640 = vld [vmem:[#allocation13 + $0x10] sm:$0xff]
          %v1641 = vld [vmem:[#allocation13 + $0x18] sm:$0xff]
          %v1642 = vld [vmem:[%s8] sm:$0x1]
          %v1644 = vlaneseq
          %v1645 = vshrl.u32 %v1644, 7
          %v1646 = vsub.s32 0, %v1645
          %v1647 = vrot.slane %v1642, %v1646
          %v1650 = vsel %vm522, %v1630, 0
          %1652 = vmatprep.subr.mxu0 0.0
          %1653 = vmatpush1.msra.mxu0 0.0
          %1654 = vmatprep.subr.mxu0 0.0
          %1655 = vmatpush1.msra.mxu0 0.0
          %1656 = vmatprep.subr.mxu0 0.0
          %1657 = vmatpush1.msra.mxu0 0.0
          %1658 = vmatprep.subr.mxu0 0.0
          %1659 = vmatpush1.msra.mxu0 0.0
          %1660 = vmatprep.subr.mxu0 0.0
          %1661 = vmatpush1.msra.mxu0 0.0
          %1662 = vmatprep.subr.mxu0 0.0
          %1663 = vmatpush1.msra.mxu0 0.0
          %1664 = vmatprep.subr.mxu0 0.0
          %1665 = vmatpush1.msra.mxu0 0.0
          %1666 = vmatprep.subr.mxu0 0.0
          %1667 = vmatpush1.msra.mxu0 0.0
          %1668 = vmatprep.subr.mxu0 0.0
          %1669 = vmatpush1.msra.mxu0 0.0
          %1670 = vmatprep.subr.mxu0 0.0
          %1671 = vmatpush1.msra.mxu0 0.0
          %1672 = vmatprep.subr.mxu0 0.0
          %1673 = vmatpush1.msra.mxu0 0.0
          %1674 = vmatprep.subr.mxu0 0.0
          %1675 = vmatpush1.msra.mxu0 0.0
          %1676 = vmatprep.subr.mxu0 0.0
          %1677 = vmatpush1.msra.mxu0 %v1641
          %1678 = vmatprep.subr.mxu0 0.0
          %1679 = vmatpush1.msra.mxu0 %v1640
          %1680 = vmatprep.subr.mxu0 0.0
          %1681 = vmatpush1.msra.mxu0 %v1639
          %1682 = vmatprep.subr.mxu0 0.0
          %1683 = vmatpush1.msra.mxu0 %v1638
          %1684 = vmatprep.subr.mxu0 0.0
          %1685 = vmatpush2.msra.mxu0 0.0
          %1686 = vmatprep.subr.mxu0 0.0
          %1687 = vmatpush2.msra.mxu0 0.0
          %1688 = vmatprep.subr.mxu0 0.0
          %1689 = vmatpush2.msra.mxu0 0.0
          %1690 = vmatprep.subr.mxu0 0.0
          %1691 = vmatpush2.msra.mxu0 0.0
          %1692 = vmatprep.subr.mxu0 0.0
          %1693 = vmatpush2.msra.mxu0 0.0
          %1694 = vmatprep.subr.mxu0 0.0
          %1695 = vmatpush2.msra.mxu0 0.0
          %1696 = vmatprep.subr.mxu0 0.0
          %1697 = vmatpush2.msra.mxu0 0.0
          %1698 = vmatprep.subr.mxu0 0.0
          %1699 = vmatpush2.msra.mxu0 0.0
          %1700 = vmatprep.subr.mxu0 0.0
          %1701 = vmatpush2.msra.mxu0 0.0
          %1702 = vmatprep.subr.mxu0 0.0
          %1703 = vmatpush2.msra.mxu0 0.0
          %1704 = vmatprep.subr.mxu0 0.0
          %1705 = vmatpush2.msra.mxu0 0.0
          %1706 = vmatprep.subr.mxu0 0.0
          %1707 = vmatpush2.msra.mxu0 0.0
          %1708 = vmatprep.subr.mxu0 0.0
          %1709 = vmatpush2.msra.mxu0 0.0
          %1710 = vmatprep.subr.mxu0 0.0
          %1711 = vmatpush2.msra.mxu0 0.0
          %1712 = vmatprep.subr.mxu0 0.0
          %1713 = vmatpush2.msra.mxu0 0.0
          %1714 = vmatprep.subr.mxu0 0.0
          %1715 = vmatpush2.msra.mxu0 0.0
          %1716 = vmatprep.mubr.f32.mxu0 0.0
          %1717 = vmatmul.mubr.f32.gmra.mxu0 %v1650
          %v1718 = vpop.f32.mrf.mxu0
          %v1719 = vadd.f32 %v1647, %v1718
          %v1720 = vpop.f32.mrf.mxu0
          %1721 = vdwg.mxu0
          %1722 = vst [vmem:[#allocation15] sm:$0x3] %v1719
        $region88: #{tpu_custom_call.1} parent=55 // pred_fallthru
          _
        // Predicated region
        $region89: #{tpu_custom_call.1} parent=55 // pred_check
          %p1723 = pneg %p234
        $region90: #{tpu_custom_call.1} parent=55 // pred_check_branch
          %1725 = sbr.rel (%p1723) target = $region92
        $region91: #{tpu_custom_call.1} parent=55 // pred_region
          %s1727 = ssub.s32 32, 32
          %1728 = vsyncadd [#allocation6], %s1727
          %s1730 = sshll.u32 [#allocation15], 4
          %s1731 = int_to_ptr.vmem [resolvable:$true] %s1730
          %1733 = dma.vmem_to_hbm [thread:$0]  %s1731, 32, %s9, [#allocation6]
        $region92: #{tpu_custom_call.1} parent=55 // pred_fallthru
          _
        // Predicated region
        $region93: #{tpu_custom_call.1} parent=55 // pred_check
          %p1734 = pneg %p234
        $region94: #{tpu_custom_call.1} parent=55 // pred_check_branch
          %1736 = sbr.rel (%p1734) target = $region96
        $region95: #{tpu_custom_call.1} parent=55 // pred_region
          %1737 = dma.done [#allocation6], 32
        $region96: #{tpu_custom_call.1} parent=55 // pred_fallthru
          _
      $region56: #{tpu_custom_call.1} parent=5 // pred_fallthru
        _
      %p1738 = scmp.le.s32.totalorder 2, %s22
      // Predicated region
      $region97: #{tpu_custom_call.1} parent=5 // pred_check
        %p1739 = pneg %p1738
      $region98: #{tpu_custom_call.1} parent=5 // pred_check_branch
        %1741 = sbr.rel (%p1739) target = $region100
      $region99: #{tpu_custom_call.1} parent=5 // pred_region
        %s1742 = ssub.s32 %s22, 2
      $region100: #{tpu_custom_call.1} parent=5 // pred_fallthru
        _
    $region6: #{tpu_custom_call.1} parent=1 // loop_footer
      %s26 = sadd.s32 1, %s22
    $region7: #{tpu_custom_call.1} parent=1 // loop_footer_branch
      %21 = sbr.rel target = $region3
    $region8: #{tpu_custom_call.1} parent=1 // loop_exit
      _
    %1743 = vsyncpa [#allocation5], 1
    %s1744 = scalar_lea.sflag [#allocation5], 1
    %1745 = vsyncpa %s1744, 1
    %1746 = vsyncpa [#allocation8], 1
    %1747 = vsyncpa [#allocation11], 1
    %1748 = vsyncpa [#allocation14], 1
    %1749 = vsyncpa [#allocation6], 1
    %s1750 = scalar_lea.sflag [#allocation6], 1
    %1751 = vsyncpa %s1750, 1

</llo_original>
